<compile_context>
chip_gen: v6e
topology: v6e:2x2x1
jax: 0.10.0
libtpu: 0.0.40
codegen_flags: <defaults>
</compile_context>

<pallas_src>
import jax
import jax.numpy as jnp
import numpy as np
from jax import lax
from jax.experimental import pallas as pl
from jax.experimental.pallas import tpu as pltpu

# MXU operand dtype. bf16 operands give full MXU rate on v5e/v6e/v7x;
# accumulation stays f32 (preferred_element_type), tolerance ~5e-2.
MXU_DTYPE = jnp.bfloat16


# ----------------------------- kernel ----------------------------------------


def _conv3x3(src, w_ref, b_ref, rows, W):
    """3x3 stride-1 conv over a zero-padded (rows+2, W+2, Cin) slab.

    Returns (rows*W, Cout) f32 = conv(src) @ w + b where w is the BN-scale
    folded weight reshaped to (3, 3*Cin, Cout).  The contraction is split into
    3 accumulated MXU matmuls (one per dy) so only a (rows*W, 3*Cin) patch is
    live at a time (vs. the full 9*Cin im2col).
    """
    Cin = src.shape[-1]
    Cout = w_ref.shape[-1]
    acc = jnp.zeros((rows * W, Cout), jnp.float32)
    for dy in range(3):
        patch = jnp.concatenate(
            [src[dy:dy + rows, dx:dx + W, :] for dx in range(3)], axis=-1)
        acc = acc + jnp.dot(
            patch.reshape(rows * W, 3 * Cin).astype(MXU_DTYPE),
            w_ref[dy],
            preferred_element_type=jnp.float32)
    return acc + b_ref[...]


def basic_block_kernel(x_ref, w1_ref, b1_ref, w2_ref, b2_ref, out_ref, mid_ref):
    """Fused conv1->bn1->relu->conv2->bn2->(+x)->relu for one row tile.

    x_ref  : (H+4, W+2, Cin) f32  — whole pre-padded image (batch squeezed);
                                    the block index is constant across the row
                                    tile axis so it is DMA'd once per image.
    out_ref: (TH, W*C) f32        — lane-dense output tile.
    mid_ref: (TH+2, W+2, C) bf16  — intermediate activation slab (+halo).
    """
    TH = out_ref.shape[0]
    _, Wp2, Cin = x_ref.shape
    C = mid_ref.shape[-1]
    W = Wp2 - 2

    t = pl.program_id(1)
    r0 = pl.multiple_of(t * TH, TH)          # first padded-x row of this tile

    # x rows needed by the fused tile: [r0-2, r0+TH+2) in image coords, which
    # is rows [r0, r0+TH+4) of the pre-padded input.
    xt = x_ref[pl.ds(r0, TH + 4), :, :]      # (TH+4, W+2, Cin) f32

    # conv1 (BN1 folded) + relu over TH+2 mid rows (1-row halo for conv2).
    y1 = _conv3x3(xt, w1_ref, b1_ref, TH + 2, W)          # ((TH+2)*W, C) f32
    y1 = jnp.maximum(y1, 0.0).astype(mid_ref.dtype)
    mid_ref[:, pl.ds(1, W), :] = y1.reshape(TH + 2, W, C)

    # Zero only conv2's halo border (not the whole slab): the 2 padding
    # columns every step, and the top/bottom halo row only at the image edges
    # (those rows are conv2 padding, NOT conv1 output).
    zcol = jnp.zeros((TH + 2, 1, C), mid_ref.dtype)
    mid_ref[:, pl.ds(0, 1), :] = zcol
    mid_ref[:, pl.ds(W + 1, 1), :] = zcol

    @pl.when(t == 0)
    def _():
        mid_ref[pl.ds(0, 1), :, :] = jnp.zeros((1, Wp2, C), mid_ref.dtype)

    @pl.when(t == pl.num_programs(1) - 1)
    def _():
        mid_ref[pl.ds(TH + 1, 1), :, :] = jnp.zeros((1, Wp2, C), mid_ref.dtype)

    # conv2 (BN2 folded) + residual + relu.
    mt = mid_ref[...]                                      # (TH+2, W+2, C) bf16
    y2 = _conv3x3(mt, w2_ref, b2_ref, TH, W)               # (TH*W, C) f32
    res = xt[2:TH + 2, 1:W + 1, :]                         # residual, f32
    out = jnp.maximum(y2.reshape(TH, W, C) + res, 0.0)

    # Lane-dense store: minor dim W*C (= 128 for the demo shape) -> unmasked.
    out_ref[...] = out.reshape(TH, W * C).astype(out_ref.dtype)


# ----------------------------- wrapper ----------------------------------------


@jax.jit
def basic_block_forward(x_nchw, params):
    """BasicBlock forward. Input/output are NCHW (PyTorch convention)."""
    x = jnp.transpose(x_nchw, (0, 2, 3, 1)).astype(jnp.float32)   # NHWC
    N, H, W, Cin = x.shape
    C = params["w1"].shape[-1]
    # TODO(synk): stride > 1 / downsample projection not implemented (default
    # BasicBlock config is stride=1, downsample=None -> requires Cin == C).
    assert Cin == C and params["w2"].shape[-1] == C

    TH = 8 if H % 8 == 0 else H          # row-tile height (multiple of 8)
    T = H // TH

    # One host-side zero pad (2 rows / 1 col per side) so the kernel never
    # pastes the input into a misaligned VMEM slab.
    x_pre = jnp.pad(x, ((0, 0), (2, 2), (1, 1), (0, 0)))

    # Fold BN scale into conv weights; reshape HWIO -> (3, 3*Cin, Cout) to
    # match the per-dy patch ordering (dx major, channel minor). bf16 for MXU.
    w1f = (params["w1"] * params["s1"]).reshape(3, 3 * Cin, C).astype(MXU_DTYPE)
    w2f = (params["w2"] * params["s2"]).reshape(3, 3 * C, C).astype(MXU_DTYPE)
    b1 = params["b1"].astype(jnp.float32)
    b2 = params["b2"].astype(jnp.float32)

    flops = 2 * 2 * N * H * W * 9 * Cin * C            # two 3x3 convs
    bytes_accessed = (x_pre.size + N * H * W * C) * 4 + (w1f.size + w2f.size) * 2

    out = pl.pallas_call(
        basic_block_kernel,
        out_shape=jax.ShapeDtypeStruct((N, H, W * C), jnp.float32),
        grid_spec=pltpu.PrefetchScalarGridSpec(
            num_scalar_prefetch=0,
            grid=(N, T),
            in_specs=[
                # Whole padded image per step; block index is constant in t so
                # the DMA is issued once per image, not once per row tile.
                pl.BlockSpec((None, H + 4, W + 2, Cin),
                             lambda n, t: (n, 0, 0, 0)),
                pl.BlockSpec((3, 3 * Cin, C), lambda n, t: (0, 0, 0)),
                pl.BlockSpec((1, C), lambda n, t: (0, 0)),
                pl.BlockSpec((3, 3 * C, C), lambda n, t: (0, 0, 0)),
                pl.BlockSpec((1, C), lambda n, t: (0, 0)),
            ],
            out_specs=pl.BlockSpec((None, TH, W * C), lambda n, t: (n, t, 0)),
            scratch_shapes=[
                # Intermediate activation slab (+1 halo row/col each side).
                # TODO(synk): for real stage shapes (C >= 64) re-derive the
                # VMEM budget for v7x (64 MiB phys / 32 MiB scoped default)
                # and set vmem_limit_bytes explicitly.
                pltpu.VMEM((TH + 2, W + 2, C), MXU_DTYPE),
            ],
        ),
        compiler_params=pltpu.CompilerParams(
            dimension_semantics=("parallel", "parallel")),
        cost_estimate=pl.CostEstimate(
            flops=flops, transcendentals=0, bytes_accessed=bytes_accessed),
    )(x_pre, w1f, b1, w2f, b2)

    out = out.reshape(N, H, W, C)
    return jnp.transpose(out, (0, 3, 1, 2))                      # NCHW


# ----------------------------- reference --------------------------------------


def reference_forward(x_nchw, params):
    x = jnp.transpose(x_nchw, (0, 2, 3, 1)).astype(jnp.float32)
    dn = ("NHWC", "HWIO", "NHWC")
    y = lax.conv_general_dilated(x, params["w1"], (1, 1), "SAME",
                                 dimension_numbers=dn)
    y = jnp.maximum(y * params["s1"] + params["b1"], 0.0)
    z = lax.conv_general_dilated(y, params["w2"], (1, 1), "SAME",
                                 dimension_numbers=dn)
    z = z * params["s2"] + params["b2"]
    z = jnp.maximum(z + x, 0.0)
    return jnp.transpose(z, (0, 3, 1, 2))


# ----------------------------- setup / main ------------------------------------


def make_params(key, inplanes, planes, eps=1e-5):
    """Deterministic synthetic parameters (inference-mode BN folded)."""
    ks = jax.random.split(key, 8)
    fan1 = 3 * 3 * inplanes
    fan2 = 3 * 3 * planes
    w1 = jax.random.normal(ks[0], (3, 3, inplanes, planes),
                           jnp.float32) * (2.0 / fan1) ** 0.5
    w2 = jax.random.normal(ks[1], (3, 3, planes, planes),
                           jnp.float32) * (2.0 / fan2) ** 0.5
    # BN1 / BN2: gamma, beta, running_mean, running_var (nontrivial values).
    g1 = 1.0 + 0.1 * jax.random.normal(ks[2], (planes,), jnp.float32)
    be1 = 0.1 * jax.random.normal(ks[3], (planes,), jnp.float32)
    m1 = 0.05 * jax.random.normal(ks[4], (planes,), jnp.float32)
    v1 = 1.0 + 0.1 * jax.random.uniform(ks[5], (planes,), jnp.float32)
    g2 = 1.0 + 0.1 * jax.random.normal(ks[6], (planes,), jnp.float32)
    be2 = 0.1 * jax.random.normal(ks[7], (planes,), jnp.float32)
    m2 = jnp.zeros((planes,), jnp.float32)
    v2 = jnp.ones((planes,), jnp.float32)

    def fold(g, b, m, v):
        s = g / jnp.sqrt(v + eps)
        return s.reshape(1, -1), (b - m * s).reshape(1, -1)

    s1, b1 = fold(g1, be1, m1, v1)
    s2, b2 = fold(g2, be2, m2, v2)
    return {"w1": w1, "s1": s1, "b1": b1, "w2": w2, "s2": s2, "b2": b2}


if __name__ == "__main__":
    N, C, H, W = 2, 8, 16, 16  # inplanes == planes == 8, stride=1
    key = jax.random.PRNGKey(0)
    kx, kp = jax.random.split(key)
    x = jax.random.normal(kx, (N, C, H, W), jnp.float32)
    params = make_params(kp, C, C)

    out = basic_block_forward(x, params)
    out = jax.block_until_ready(out)

    ref = reference_forward(x, params)
    # bf16 MXU operands -> relaxed tolerance (accumulation is still f32).
    np.testing.assert_allclose(np.asarray(out), np.asarray(ref),
                               rtol=5e-2, atol=5e-2)
    assert out.shape == (N, C, H, W)
    print("KERNEL_OK")
</pallas_src>

<mosaic_0001>
module attributes {stable_mosaic.version = 11 : i64} {
  func.func @basic_block_kernel(%arg0: i32, %arg1: i32, %arg2: memref<1x20x18x8xf32, #tpu.memory_space<vmem>>, %arg3: memref<3x24x8xbf16, #tpu.memory_space<vmem>>, %arg4: memref<1x8xf32, #tpu.memory_space<vmem>>, %arg5: memref<3x24x8xbf16, #tpu.memory_space<vmem>>, %arg6: memref<1x8xf32, #tpu.memory_space<vmem>>, %arg7: memref<1x8x128xf32, #tpu.memory_space<vmem>>, %arg8: memref<10x18x8xbf16, #tpu.memory_space<vmem>>) attributes {dimension_semantics = [#tpu.dimension_semantics<parallel>, #tpu.dimension_semantics<parallel>], iteration_bounds = array<i64: 2, 2>, scalar_prefetch = 0 : i64, scratch_operands = 1 : i64, tpu.core_type = #tpu.core_type<tc>, window_params = [{transform_indices = @transform_0, window_bounds = array<i64: 1, 20, 18, 8>}, {pipeline_mode = #tpu.pipeline_mode<synchronous>, transform_indices = @transform_1, window_bounds = array<i64: 3, 24, 8>}, {pipeline_mode = #tpu.pipeline_mode<synchronous>, transform_indices = @transform_2, window_bounds = array<i64: 1, 8>}, {pipeline_mode = #tpu.pipeline_mode<synchronous>, transform_indices = @transform_3, window_bounds = array<i64: 3, 24, 8>}, {pipeline_mode = #tpu.pipeline_mode<synchronous>, transform_indices = @transform_4, window_bounds = array<i64: 1, 8>}, {transform_indices = @transform_5, window_bounds = array<i64: 1, 8, 128>}]} {
    %c8_i32 = arith.constant 8 : i32
    %0 = arith.muli %arg1, %c8_i32 : i32
    %1 = tpu.assume_multiple %0, 8 : i32
    %c0 = arith.constant 0 : index
    %2 = arith.index_cast %1 : i32 to index
    %c0_0 = arith.constant 0 : index
    %c0_1 = arith.constant 0 : index
    %3 = vector.load %arg2[%c0, %2, %c0_0, %c0_1] : memref<1x20x18x8xf32, #tpu.memory_space<vmem>>, vector<1x12x18x8xf32>
    %4 = vector.shape_cast %3 : vector<1x12x18x8xf32> to vector<12x18x8xf32>
    %cst = arith.constant 0.000000e+00 : f32
    %5 = vector.broadcast %cst : f32 to vector<160x8xf32>
    %6 = vector.extract_strided_slice %4 {offsets = [0, 0, 0], sizes = [10, 16, 8], strides = [1, 1, 1]} : vector<12x18x8xf32> to vector<10x16x8xf32>
    %7 = vector.extract_strided_slice %4 {offsets = [0, 1, 0], sizes = [10, 16, 8], strides = [1, 1, 1]} : vector<12x18x8xf32> to vector<10x16x8xf32>
    %8 = vector.extract_strided_slice %4 {offsets = [0, 2, 0], sizes = [10, 16, 8], strides = [1, 1, 1]} : vector<12x18x8xf32> to vector<10x16x8xf32>
    %9 = tpu.concatenate %6, %7, %8 in 2 : vector<10x16x8xf32>, vector<10x16x8xf32>, vector<10x16x8xf32> -> vector<10x16x24xf32>
    %10 = vector.shape_cast %9 : vector<10x16x24xf32> to vector<160x24xf32>
    %11 = arith.truncf %10 : vector<160x24xf32> to vector<160x24xbf16>
    %c0_2 = arith.constant 0 : index
    %c0_3 = arith.constant 0 : index
    %c0_4 = arith.constant 0 : index
    %12 = vector.load %arg3[%c0_2, %c0_3, %c0_4] : memref<3x24x8xbf16, #tpu.memory_space<vmem>>, vector<1x24x8xbf16>
    %13 = vector.shape_cast %12 : vector<1x24x8xbf16> to vector<24x8xbf16>
    %cst_5 = arith.constant dense<0.000000e+00> : vector<160x8xf32>
    %14 = tpu.matmul %11, %13, %cst_5 {dimension_numbers = #tpu.dot_dimension_numbers<[1], [0], [0], [1], [0, 0, 1, 1], [], []>} : vector<160x24xbf16>, vector<24x8xbf16>, vector<160x8xf32> -> vector<160x8xf32>
    %15 = arith.addf %5, %14 : vector<160x8xf32>
    %16 = vector.extract_strided_slice %4 {offsets = [1, 0, 0], sizes = [10, 16, 8], strides = [1, 1, 1]} : vector<12x18x8xf32> to vector<10x16x8xf32>
    %17 = vector.extract_strided_slice %4 {offsets = [1, 1, 0], sizes = [10, 16, 8], strides = [1, 1, 1]} : vector<12x18x8xf32> to vector<10x16x8xf32>
    %18 = vector.extract_strided_slice %4 {offsets = [1, 2, 0], sizes = [10, 16, 8], strides = [1, 1, 1]} : vector<12x18x8xf32> to vector<10x16x8xf32>
    %19 = tpu.concatenate %16, %17, %18 in 2 : vector<10x16x8xf32>, vector<10x16x8xf32>, vector<10x16x8xf32> -> vector<10x16x24xf32>
    %20 = vector.shape_cast %19 : vector<10x16x24xf32> to vector<160x24xf32>
    %21 = arith.truncf %20 : vector<160x24xf32> to vector<160x24xbf16>
    %c1 = arith.constant 1 : index
    %c0_6 = arith.constant 0 : index
    %c0_7 = arith.constant 0 : index
    %22 = vector.load %arg3[%c1, %c0_6, %c0_7] : memref<3x24x8xbf16, #tpu.memory_space<vmem>>, vector<1x24x8xbf16>
    %23 = vector.shape_cast %22 : vector<1x24x8xbf16> to vector<24x8xbf16>
    %cst_8 = arith.constant dense<0.000000e+00> : vector<160x8xf32>
    %24 = tpu.matmul %21, %23, %cst_8 {dimension_numbers = #tpu.dot_dimension_numbers<[1], [0], [0], [1], [0, 0, 1, 1], [], []>} : vector<160x24xbf16>, vector<24x8xbf16>, vector<160x8xf32> -> vector<160x8xf32>
    %25 = arith.addf %15, %24 : vector<160x8xf32>
    %26 = vector.extract_strided_slice %4 {offsets = [2, 0, 0], sizes = [10, 16, 8], strides = [1, 1, 1]} : vector<12x18x8xf32> to vector<10x16x8xf32>
    %27 = vector.extract_strided_slice %4 {offsets = [2, 1, 0], sizes = [10, 16, 8], strides = [1, 1, 1]} : vector<12x18x8xf32> to vector<10x16x8xf32>
    %28 = vector.extract_strided_slice %4 {offsets = [2, 2, 0], sizes = [10, 16, 8], strides = [1, 1, 1]} : vector<12x18x8xf32> to vector<10x16x8xf32>
    %29 = tpu.concatenate %26, %27, %28 in 2 : vector<10x16x8xf32>, vector<10x16x8xf32>, vector<10x16x8xf32> -> vector<10x16x24xf32>
    %30 = vector.shape_cast %29 : vector<10x16x24xf32> to vector<160x24xf32>
    %31 = arith.truncf %30 : vector<160x24xf32> to vector<160x24xbf16>
    %c2 = arith.constant 2 : index
    %c0_9 = arith.constant 0 : index
    %c0_10 = arith.constant 0 : index
    %32 = vector.load %arg3[%c2, %c0_9, %c0_10] : memref<3x24x8xbf16, #tpu.memory_space<vmem>>, vector<1x24x8xbf16>
    %33 = vector.shape_cast %32 : vector<1x24x8xbf16> to vector<24x8xbf16>
    %cst_11 = arith.constant dense<0.000000e+00> : vector<160x8xf32>
    %34 = tpu.matmul %31, %33, %cst_11 {dimension_numbers = #tpu.dot_dimension_numbers<[1], [0], [0], [1], [0, 0, 1, 1], [], []>} : vector<160x24xbf16>, vector<24x8xbf16>, vector<160x8xf32> -> vector<160x8xf32>
    %35 = arith.addf %25, %34 : vector<160x8xf32>
    %c0_12 = arith.constant 0 : index
    %c0_13 = arith.constant 0 : index
    %36 = vector.load %arg4[%c0_12, %c0_13] : memref<1x8xf32, #tpu.memory_space<vmem>>, vector<1x8xf32>
    %37 = vector.broadcast %36 : vector<1x8xf32> to vector<160x8xf32>
    %38 = arith.addf %35, %37 : vector<160x8xf32>
    %cst_14 = arith.constant 0.000000e+00 : f32
    %39 = vector.broadcast %cst_14 : f32 to vector<160x8xf32>
    %40 = arith.maximumf %38, %39 : vector<160x8xf32>
    %41 = arith.truncf %40 : vector<160x8xf32> to vector<160x8xbf16>
    %42 = vector.shape_cast %41 : vector<160x8xbf16> to vector<10x16x8xbf16>
    %c0_15 = arith.constant 0 : index
    %c1_16 = arith.constant 1 : index
    %c0_17 = arith.constant 0 : index
    %43 = vector.load %arg8[%c0_15, %c1_16, %c0_17] : memref<10x18x8xbf16, #tpu.memory_space<vmem>>, vector<10x16x8xbf16>
    tpu.vector_store %arg8[%c0_15, %c1_16, %c0_17], %42 {strides = array<i32>} : memref<10x18x8xbf16, #tpu.memory_space<vmem>>, vector<10x16x8xbf16>,
    %cst_18 = arith.constant 0.000000e+00 : bf16
    %44 = vector.broadcast %cst_18 : bf16 to vector<10x1x8xbf16>
    %c0_19 = arith.constant 0 : index
    %c0_20 = arith.constant 0 : index
    %c0_21 = arith.constant 0 : index
    %45 = vector.load %arg8[%c0_19, %c0_20, %c0_21] : memref<10x18x8xbf16, #tpu.memory_space<vmem>>, vector<10x1x8xbf16>
    tpu.vector_store %arg8[%c0_19, %c0_20, %c0_21], %44 {strides = array<i32>} : memref<10x18x8xbf16, #tpu.memory_space<vmem>>, vector<10x1x8xbf16>,
    %c0_22 = arith.constant 0 : index
    %c17 = arith.constant 17 : index
    %c0_23 = arith.constant 0 : index
    %46 = vector.load %arg8[%c0_22, %c17, %c0_23] : memref<10x18x8xbf16, #tpu.memory_space<vmem>>, vector<10x1x8xbf16>
    tpu.vector_store %arg8[%c0_22, %c17, %c0_23], %44 {strides = array<i32>} : memref<10x18x8xbf16, #tpu.memory_space<vmem>>, vector<10x1x8xbf16>,
    %c0_i32 = arith.constant 0 : i32
    %47 = arith.cmpi eq, %arg1, %c0_i32 : i32
    %48 = arith.extui %47 : i1 to i32
    %c0_i32_24 = arith.constant 0 : i32
    %49 = arith.cmpi ne, %48, %c0_i32_24 : i32
    scf.if %49 {
      %cst_48 = arith.constant 0.000000e+00 : bf16
      %94 = vector.broadcast %cst_48 : bf16 to vector<1x18x8xbf16>
      %c0_49 = arith.constant 0 : index
      %c0_50 = arith.constant 0 : index
      %c0_51 = arith.constant 0 : index
      %95 = vector.load %arg8[%c0_49, %c0_50, %c0_51] : memref<10x18x8xbf16, #tpu.memory_space<vmem>>, vector<1x18x8xbf16>
      tpu.vector_store %arg8[%c0_49, %c0_50, %c0_51], %94 {strides = array<i32>} : memref<10x18x8xbf16, #tpu.memory_space<vmem>>, vector<1x18x8xbf16>,
    } else {
    }
    %c1_i32 = arith.constant 1 : i32
    %50 = arith.cmpi eq, %arg1, %c1_i32 : i32
    %51 = arith.extui %50 : i1 to i32
    %c0_i32_25 = arith.constant 0 : i32
    %52 = arith.cmpi ne, %51, %c0_i32_25 : i32
    scf.if %52 {
      %cst_48 = arith.constant 0.000000e+00 : bf16
      %94 = vector.broadcast %cst_48 : bf16 to vector<1x18x8xbf16>
      %c9 = arith.constant 9 : index
      %c0_49 = arith.constant 0 : index
      %c0_50 = arith.constant 0 : index
      %95 = vector.load %arg8[%c9, %c0_49, %c0_50] : memref<10x18x8xbf16, #tpu.memory_space<vmem>>, vector<1x18x8xbf16>
      tpu.vector_store %arg8[%c9, %c0_49, %c0_50], %94 {strides = array<i32>} : memref<10x18x8xbf16, #tpu.memory_space<vmem>>, vector<1x18x8xbf16>,
    } else {
    }
    %c0_26 = arith.constant 0 : index
    %c0_27 = arith.constant 0 : index
    %c0_28 = arith.constant 0 : index
    %53 = vector.load %arg8[%c0_26, %c0_27, %c0_28] : memref<10x18x8xbf16, #tpu.memory_space<vmem>>, vector<10x18x8xbf16>
    %cst_29 = arith.constant 0.000000e+00 : f32
    %54 = vector.broadcast %cst_29 : f32 to vector<128x8xf32>
    %55 = vector.extract_strided_slice %53 {offsets = [0, 0, 0], sizes = [8, 16, 8], strides = [1, 1, 1]} : vector<10x18x8xbf16> to vector<8x16x8xbf16>
    %56 = vector.extract_strided_slice %53 {offsets = [0, 1, 0], sizes = [8, 16, 8], strides = [1, 1, 1]} : vector<10x18x8xbf16> to vector<8x16x8xbf16>
    %57 = vector.extract_strided_slice %53 {offsets = [0, 2, 0], sizes = [8, 16, 8], strides = [1, 1, 1]} : vector<10x18x8xbf16> to vector<8x16x8xbf16>
    %58 = tpu.concatenate %55, %56, %57 in 2 : vector<8x16x8xbf16>, vector<8x16x8xbf16>, vector<8x16x8xbf16> -> vector<8x16x24xbf16>
    %59 = vector.shape_cast %58 : vector<8x16x24xbf16> to vector<128x24xbf16>
    %c0_30 = arith.constant 0 : index
    %c0_31 = arith.constant 0 : index
    %c0_32 = arith.constant 0 : index
    %60 = vector.load %arg5[%c0_30, %c0_31, %c0_32] : memref<3x24x8xbf16, #tpu.memory_space<vmem>>, vector<1x24x8xbf16>
    %61 = vector.shape_cast %60 : vector<1x24x8xbf16> to vector<24x8xbf16>
    %cst_33 = arith.constant dense<0.000000e+00> : vector<128x8xf32>
    %62 = tpu.matmul %59, %61, %cst_33 {dimension_numbers = #tpu.dot_dimension_numbers<[1], [0], [0], [1], [0, 0, 1, 1], [], []>} : vector<128x24xbf16>, vector<24x8xbf16>, vector<128x8xf32> -> vector<128x8xf32>
    %63 = arith.addf %54, %62 : vector<128x8xf32>
    %64 = vector.extract_strided_slice %53 {offsets = [1, 0, 0], sizes = [8, 16, 8], strides = [1, 1, 1]} : vector<10x18x8xbf16> to vector<8x16x8xbf16>
    %65 = vector.extract_strided_slice %53 {offsets = [1, 1, 0], sizes = [8, 16, 8], strides = [1, 1, 1]} : vector<10x18x8xbf16> to vector<8x16x8xbf16>
    %66 = vector.extract_strided_slice %53 {offsets = [1, 2, 0], sizes = [8, 16, 8], strides = [1, 1, 1]} : vector<10x18x8xbf16> to vector<8x16x8xbf16>
    %67 = tpu.concatenate %64, %65, %66 in 2 : vector<8x16x8xbf16>, vector<8x16x8xbf16>, vector<8x16x8xbf16> -> vector<8x16x24xbf16>
    %68 = vector.shape_cast %67 : vector<8x16x24xbf16> to vector<128x24xbf16>
    %c1_34 = arith.constant 1 : index
    %c0_35 = arith.constant 0 : index
    %c0_36 = arith.constant 0 : index
    %69 = vector.load %arg5[%c1_34, %c0_35, %c0_36] : memref<3x24x8xbf16, #tpu.memory_space<vmem>>, vector<1x24x8xbf16>
    %70 = vector.shape_cast %69 : vector<1x24x8xbf16> to vector<24x8xbf16>
    %cst_37 = arith.constant dense<0.000000e+00> : vector<128x8xf32>
    %71 = tpu.matmul %68, %70, %cst_37 {dimension_numbers = #tpu.dot_dimension_numbers<[1], [0], [0], [1], [0, 0, 1, 1], [], []>} : vector<128x24xbf16>, vector<24x8xbf16>, vector<128x8xf32> -> vector<128x8xf32>
    %72 = arith.addf %63, %71 : vector<128x8xf32>
    %73 = vector.extract_strided_slice %53 {offsets = [2, 0, 0], sizes = [8, 16, 8], strides = [1, 1, 1]} : vector<10x18x8xbf16> to vector<8x16x8xbf16>
    %74 = vector.extract_strided_slice %53 {offsets = [2, 1, 0], sizes = [8, 16, 8], strides = [1, 1, 1]} : vector<10x18x8xbf16> to vector<8x16x8xbf16>
    %75 = vector.extract_strided_slice %53 {offsets = [2, 2, 0], sizes = [8, 16, 8], strides = [1, 1, 1]} : vector<10x18x8xbf16> to vector<8x16x8xbf16>
    %76 = tpu.concatenate %73, %74, %75 in 2 : vector<8x16x8xbf16>, vector<8x16x8xbf16>, vector<8x16x8xbf16> -> vector<8x16x24xbf16>
    %77 = vector.shape_cast %76 : vector<8x16x24xbf16> to vector<128x24xbf16>
    %c2_38 = arith.constant 2 : index
    %c0_39 = arith.constant 0 : index
    %c0_40 = arith.constant 0 : index
    %78 = vector.load %arg5[%c2_38, %c0_39, %c0_40] : memref<3x24x8xbf16, #tpu.memory_space<vmem>>, vector<1x24x8xbf16>
    %79 = vector.shape_cast %78 : vector<1x24x8xbf16> to vector<24x8xbf16>
    %cst_41 = arith.constant dense<0.000000e+00> : vector<128x8xf32>
    %80 = tpu.matmul %77, %79, %cst_41 {dimension_numbers = #tpu.dot_dimension_numbers<[1], [0], [0], [1], [0, 0, 1, 1], [], []>} : vector<128x24xbf16>, vector<24x8xbf16>, vector<128x8xf32> -> vector<128x8xf32>
    %81 = arith.addf %72, %80 : vector<128x8xf32>
    %c0_42 = arith.constant 0 : index
    %c0_43 = arith.constant 0 : index
    %82 = vector.load %arg6[%c0_42, %c0_43] : memref<1x8xf32, #tpu.memory_space<vmem>>, vector<1x8xf32>
    %83 = vector.broadcast %82 : vector<1x8xf32> to vector<128x8xf32>
    %84 = arith.addf %81, %83 : vector<128x8xf32>
    %85 = vector.extract_strided_slice %4 {offsets = [2, 1, 0], sizes = [8, 16, 8], strides = [1, 1, 1]} : vector<12x18x8xf32> to vector<8x16x8xf32>
    %86 = vector.shape_cast %84 : vector<128x8xf32> to vector<8x16x8xf32>
    %87 = arith.addf %86, %85 : vector<8x16x8xf32>
    %cst_44 = arith.constant 0.000000e+00 : f32
    %88 = vector.broadcast %cst_44 : f32 to vector<8x16x8xf32>
    %89 = arith.maximumf %87, %88 : vector<8x16x8xf32>
    %90 = vector.shape_cast %89 : vector<8x16x8xf32> to vector<8x128xf32>
    %c0_45 = arith.constant 0 : index
    %c0_46 = arith.constant 0 : index
    %c0_47 = arith.constant 0 : index
    %91 = vector.load %arg7[%c0_45, %c0_46, %c0_47] : memref<1x8x128xf32, #tpu.memory_space<vmem>>, vector<1x8x128xf32>
    %92 = vector.shape_cast %91 : vector<1x8x128xf32> to vector<8x128xf32>
    %93 = vector.shape_cast %90 : vector<8x128xf32> to vector<1x8x128xf32>
    tpu.vector_store %arg7[%c0_45, %c0_46, %c0_47], %93 {strides = array<i32>} : memref<1x8x128xf32, #tpu.memory_space<vmem>>, vector<1x8x128xf32>,
    return
  }
  func.func @transform_0(%arg0: i32, %arg1: i32) -> (i32, i32, i32, i32) {
    %c0_i32 = arith.constant 0 : i32
    %c0_i32_0 = arith.constant 0 : i32
    %c0_i32_1 = arith.constant 0 : i32
    %c0_i32_2 = arith.constant 0 : i32
    return %arg0, %c0_i32, %c0_i32_0, %c0_i32_1 : i32, i32, i32, i32
  }
  func.func @transform_1(%arg0: i32, %arg1: i32) -> (i32, i32, i32) {
    %c0_i32 = arith.constant 0 : i32
    %c0_i32_0 = arith.constant 0 : i32
    %c0_i32_1 = arith.constant 0 : i32
    %c0_i32_2 = arith.constant 0 : i32
    return %c0_i32, %c0_i32_0, %c0_i32_1 : i32, i32, i32
  }
  func.func @transform_2(%arg0: i32, %arg1: i32) -> (i32, i32) {
    %c0_i32 = arith.constant 0 : i32
    %c0_i32_0 = arith.constant 0 : i32
    %c0_i32_1 = arith.constant 0 : i32
    return %c0_i32, %c0_i32_0 : i32, i32
  }
  func.func @transform_3(%arg0: i32, %arg1: i32) -> (i32, i32, i32) {
    %c0_i32 = arith.constant 0 : i32
    %c0_i32_0 = arith.constant 0 : i32
    %c0_i32_1 = arith.constant 0 : i32
    %c0_i32_2 = arith.constant 0 : i32
    return %c0_i32, %c0_i32_0, %c0_i32_1 : i32, i32, i32
  }
  func.func @transform_4(%arg0: i32, %arg1: i32) -> (i32, i32) {
    %c0_i32 = arith.constant 0 : i32
    %c0_i32_0 = arith.constant 0 : i32
    %c0_i32_1 = arith.constant 0 : i32
    return %c0_i32, %c0_i32_0 : i32, i32
  }
  func.func @transform_5(%arg0: i32, %arg1: i32) -> (i32, i32, i32) {
    %c0_i32 = arith.constant 0 : i32
    %c0_i32_0 = arith.constant 0 : i32
    return %arg0, %arg1, %c0_i32 : i32, i32, i32
  }
}

</mosaic_0001>

<llo_original>
// kernel: basic_block_forward.1
$region0: #{basic_block_forward.1}
  #allocation0 [shape = 'u32[]', space=smem, size = 0x4, offset = 0x4, fixed_abs, tag = 'smem constant byte address 0x4 - core index']
  #allocation1 [shape = 'u32[144,128]{1,0:T(1,128)}', space=vmem, size = 0x12000, scoped, tag = 'internal scratch']
  #allocation2 [shape = 'bf16[10,18,8]{2,1,0:T(8,128)(2,1)}', space=vmem, size = 0xf000, scoped, tag = 'scratch operand']
  %s0 = inlined_call_operand.vmem [shape: f32[2,20,18,8], index: 0, kind: input, shape index: {}]
  %s1 = inlined_call_operand.vmem [shape: bf16[3,24,8], index: 1, kind: input, shape index: {}]
  %s2 = inlined_call_operand.vmem [shape: f32[1,8], index: 2, kind: input, shape index: {}]
  %s3 = inlined_call_operand.vmem [shape: bf16[3,24,8], index: 3, kind: input, shape index: {}]
  %s4 = inlined_call_operand.vmem [shape: f32[1,8], index: 4, kind: input, shape index: {}]
  %s5 = inlined_call_operand.vmem [shape: f32[2,16,128], index: 5, kind: output, shape index: {}]
  %s6 = sld [smem:[#allocation0]]
  $region61: #{basic_block_forward.1} parent=0
    _
  %s8 = ssub.s32 1, %s6
  %s9 = scalar_select 0, %s8, %s6
  loop: start=0, step=1, limit=6
  $region2: #{basic_block_forward.1} parent=0 // loop_pre_header
    _
  $region3: #{basic_block_forward.1} parent=0 // loop_header
    %s11 = sphi 0, %s15
    %p12 = scmp.ge.s32.totalorder %s11, 6
    %s18 = sphi 0, %s30
    %s19 = sphi 0, %s26
    %s20 = sphi 0, %s18
    %s21 = sphi 0, %s19
    %s22 = sphi 0, %s20
    %s23 = sphi 0, %s21
    %s33 = sphi 0, %s35
    %s36 = sphi 0, %s33
    %s37 = sphi 0, %s36
    %s53 = sphi 0, %s37
    %s57 = sphi 0, %s57
    %s59 = sphi 0, %s57
    %s60 = sphi 0, %s59
    %s74 = sphi 0, %s60
    %s78 = sphi 0, %s78
    %s80 = sphi 0, %s78
    %s81 = sphi 0, %s80
    %s95 = sphi 0, %s81
    %s99 = sphi 0, %s99
    %s101 = sphi 0, %s99
    %s102 = sphi 0, %s101
    %s116 = sphi 0, %s102
    %s120 = sphi 0, %s120
    %s122 = sphi 0, %s120
    %s123 = sphi 0, %s122
    %s137 = sphi 0, %s123
    %s145 = sphi 0, %s147
    %s148 = sphi 0, %s145
    %s149 = sphi 0, %s148
    %s165 = sphi 0, %s149
  $region4: #{basic_block_forward.1} parent=0 // loop_header_branch
    %14 = sbr.rel (%p12) target = $region8
  $region5: #{basic_block_forward.1} parent=0 // loop_body
    %s16 = ssub.s32 %s11, 1
    %s17 = ssub.s32 %s11, 2
    %s24 = sadd.s32 1, %s19
    %p25 = scmp.ge.s32.totalorder %s24, 2
    %s26 = scalar_select %p25, 0, %s24
    %s27 = sadd.s32 1, %s18
    %s28 = scalar_select %p25, %s27, %s18
    %p29 = scmp.ge.s32.totalorder %s28, 2
    %s30 = scalar_select %p29, 0, %s28
    %s31 = ssub.s32 %s18, %s30
    %p32 = scmp.eq.s32.totalorder %s31, 0
    %s34 = sadd.s32 %s33, 1
    %s35 = scalar_select %p32, %s33, %s34
    %p38 = pneg %p32
    %p39 = scmp.eq.s32.totalorder %s11, 3
    %p40 = por %p38, %p39
    %p41 = scmp.ne.s32.totalorder %s33, %s36
    %p42 = scmp.eq.s32.totalorder %s11, 0
    %p43 = por %p41, %p42
    %p44 = scmp.ne.s32.totalorder %s33, %s36
    %p45 = scmp.eq.s32.totalorder %s16, 3
    %p46 = por %p44, %p45
    %p47 = scmp.ne.s32.totalorder %s36, %s37
    %p48 = scmp.eq.s32.totalorder %s16, 0
    %p49 = por %p47, %p48
    %p50 = scmp.ne.s32.totalorder %s36, %s37
    %p51 = scmp.eq.s32.totalorder %s17, 3
    %p52 = por %p50, %p51
    %p54 = scmp.ne.s32.totalorder %s37, %s53
    %p55 = scmp.eq.s32.totalorder %s17, 0
    %p56 = por %p54, %p55
    %s58 = sadd.s32 %s57, 1
    %p61 = scmp.eq.s32.totalorder %s11, 3
    %p62 = scmp.ne.s32.totalorder %s57, %s59
    %p63 = scmp.eq.s32.totalorder %s11, 0
    %p64 = por %p62, %p63
    %p65 = scmp.ne.s32.totalorder %s57, %s59
    %p66 = scmp.eq.s32.totalorder %s16, 3
    %p67 = por %p65, %p66
    %p68 = scmp.ne.s32.totalorder %s59, %s60
    %p69 = scmp.eq.s32.totalorder %s16, 0
    %p70 = por %p68, %p69
    %p71 = scmp.ne.s32.totalorder %s59, %s60
    %p72 = scmp.eq.s32.totalorder %s17, 3
    %p73 = por %p71, %p72
    %p75 = scmp.ne.s32.totalorder %s60, %s74
    %p76 = scmp.eq.s32.totalorder %s17, 0
    %p77 = por %p75, %p76
    %s79 = sadd.s32 %s78, 1
    %p82 = scmp.eq.s32.totalorder %s11, 3
    %p83 = scmp.ne.s32.totalorder %s78, %s80
    %p84 = scmp.eq.s32.totalorder %s11, 0
    %p85 = por %p83, %p84
    %p86 = scmp.ne.s32.totalorder %s78, %s80
    %p87 = scmp.eq.s32.totalorder %s16, 3
    %p88 = por %p86, %p87
    %p89 = scmp.ne.s32.totalorder %s80, %s81
    %p90 = scmp.eq.s32.totalorder %s16, 0
    %p91 = por %p89, %p90
    %p92 = scmp.ne.s32.totalorder %s80, %s81
    %p93 = scmp.eq.s32.totalorder %s17, 3
    %p94 = por %p92, %p93
    %p96 = scmp.ne.s32.totalorder %s81, %s95
    %p97 = scmp.eq.s32.totalorder %s17, 0
    %p98 = por %p96, %p97
    %s100 = sadd.s32 %s99, 1
    %p103 = scmp.eq.s32.totalorder %s11, 3
    %p104 = scmp.ne.s32.totalorder %s99, %s101
    %p105 = scmp.eq.s32.totalorder %s11, 0
    %p106 = por %p104, %p105
    %p107 = scmp.ne.s32.totalorder %s99, %s101
    %p108 = scmp.eq.s32.totalorder %s16, 3
    %p109 = por %p107, %p108
    %p110 = scmp.ne.s32.totalorder %s101, %s102
    %p111 = scmp.eq.s32.totalorder %s16, 0
    %p112 = por %p110, %p111
    %p113 = scmp.ne.s32.totalorder %s101, %s102
    %p114 = scmp.eq.s32.totalorder %s17, 3
    %p115 = por %p113, %p114
    %p117 = scmp.ne.s32.totalorder %s102, %s116
    %p118 = scmp.eq.s32.totalorder %s17, 0
    %p119 = por %p117, %p118
    %s121 = sadd.s32 %s120, 1
    %p124 = scmp.eq.s32.totalorder %s11, 3
    %p125 = scmp.ne.s32.totalorder %s120, %s122
    %p126 = scmp.eq.s32.totalorder %s11, 0
    %p127 = por %p125, %p126
    %p128 = scmp.ne.s32.totalorder %s120, %s122
    %p129 = scmp.eq.s32.totalorder %s16, 3
    %p130 = por %p128, %p129
    %p131 = scmp.ne.s32.totalorder %s122, %s123
    %p132 = scmp.eq.s32.totalorder %s16, 0
    %p133 = por %p131, %p132
    %p134 = scmp.ne.s32.totalorder %s122, %s123
    %p135 = scmp.eq.s32.totalorder %s17, 3
    %p136 = por %p134, %p135
    %p138 = scmp.ne.s32.totalorder %s123, %s137
    %p139 = scmp.eq.s32.totalorder %s17, 0
    %p140 = por %p138, %p139
    %s141 = ssub.s32 %s18, %s30
    %s142 = ssub.s32 %s19, %s26
    %s143 = sor.u32 %s141, %s142
    %p144 = scmp.eq.s32.totalorder %s143, 0
    %s146 = sadd.s32 %s145, 1
    %s147 = scalar_select %p144, %s145, %s146
    %p150 = pneg %p144
    %p151 = scmp.eq.s32.totalorder %s11, 3
    %p152 = por %p150, %p151
    %p153 = scmp.ne.s32.totalorder %s145, %s148
    %p154 = scmp.eq.s32.totalorder %s11, 0
    %p155 = por %p153, %p154
    %p156 = scmp.ne.s32.totalorder %s145, %s148
    %p157 = scmp.eq.s32.totalorder %s16, 3
    %p158 = por %p156, %p157
    %p159 = scmp.ne.s32.totalorder %s148, %s149
    %p160 = scmp.eq.s32.totalorder %s16, 0
    %p161 = por %p159, %p160
    %p162 = scmp.ne.s32.totalorder %s148, %s149
    %p163 = scmp.eq.s32.totalorder %s17, 3
    %p164 = por %p162, %p163
    %p166 = scmp.ne.s32.totalorder %s149, %s165
    %p167 = scmp.eq.s32.totalorder %s17, 0
    %p168 = por %p166, %p167
    %p169 = scmp.le.s32.totalorder 1, %s11
    %p170 = scmp.lt.s32.totalorder %s11, 5
    %p171 = pnand %p169, %p170
    %p172 = pneg %p171
    // Predicated region
    $region9: #{basic_block_forward.1} parent=5 // pred_check
      _
    $region10: #{basic_block_forward.1} parent=5 // pred_check_branch
      %174 = sbr.rel (%p171) target = $region12
    $region11: #{basic_block_forward.1} parent=5 // pred_region
      %s175 = ssub.s32 %s11, 1
      // Predicated region
      $region13: #{basic_block_forward.1} parent=11 // pred_check
        %p176 = pneg %p70
      $region14: #{basic_block_forward.1} parent=11 // pred_check_branch
        %178 = sbr.rel (%p176) target = $region16
      $region15: #{basic_block_forward.1} parent=11 // pred_region
        _
      $region16: #{basic_block_forward.1} parent=11 // pred_fallthru
        _
      // Predicated region
      $region17: #{basic_block_forward.1} parent=11 // pred_check
        %p179 = pneg %p91
      $region18: #{basic_block_forward.1} parent=11 // pred_check_branch
        %181 = sbr.rel (%p179) target = $region20
      $region19: #{basic_block_forward.1} parent=11 // pred_region
        _
      $region20: #{basic_block_forward.1} parent=11 // pred_fallthru
        _
      // Predicated region
      $region21: #{basic_block_forward.1} parent=11 // pred_check
        %p182 = pneg %p112
      $region22: #{basic_block_forward.1} parent=11 // pred_check_branch
        %184 = sbr.rel (%p182) target = $region24
      $region23: #{basic_block_forward.1} parent=11 // pred_region
        _
      $region24: #{basic_block_forward.1} parent=11 // pred_fallthru
        _
      // Predicated region
      $region25: #{basic_block_forward.1} parent=11 // pred_check
        %p185 = pneg %p133
      $region26: #{basic_block_forward.1} parent=11 // pred_check_branch
        %187 = sbr.rel (%p185) target = $region28
      $region27: #{basic_block_forward.1} parent=11 // pred_region
        _
      $region28: #{basic_block_forward.1} parent=11 // pred_fallthru
        _
    $region12: #{basic_block_forward.1} parent=5 // pred_fallthru
      _
    %p188 = scmp.lt.s32.totalorder %s11, 4
    // Predicated region
    $region29: #{basic_block_forward.1} parent=5 // pred_check
      %p189 = pneg %p188
    $region30: #{basic_block_forward.1} parent=5 // pred_check_branch
      %191 = sbr.rel (%p189) target = $region32
    $region31: #{basic_block_forward.1} parent=5 // pred_region
      // Predicated region
      $region33: #{basic_block_forward.1} parent=31 // pred_check
        %p192 = pneg %p43
      $region34: #{basic_block_forward.1} parent=31 // pred_check_branch
        %194 = sbr.rel (%p192) target = $region36
      $region35: #{basic_block_forward.1} parent=31 // pred_region
        %p195 = scmp.lt.s32.totalorder %s18, 1
        %s196 = scalar_select %p195, %s18, 1
        %s197 = smul.addr %s196, 60
        %s198 = smul.addr %s197, 8
        %s199 = scalar_lea.vmem %s0, %s198
      $region36: #{basic_block_forward.1} parent=31 // pred_fallthru
        _
    $region32: #{basic_block_forward.1} parent=5 // pred_fallthru
      _
    %p200 = scmp.le.s32.totalorder 1, %s11
    %p201 = scmp.lt.s32.totalorder %s11, 5
    %p202 = pnand %p200, %p201
    %p203 = pneg %p202
    // Predicated region
    $region37: #{basic_block_forward.1} parent=5 // pred_check
      _
    $region38: #{basic_block_forward.1} parent=5 // pred_check_branch
      %205 = sbr.rel (%p202) target = $region40
    $region39: #{basic_block_forward.1} parent=5 // pred_region
      %s206 = ssub.s32 %s11, 1
      %p207 = scmp.lt.s32.totalorder %s20, 1
      %s208 = scalar_select %p207, %s20, 1
      %s209 = smul.addr %s208, 60
      %s210 = smul.addr %s209, 8
      %s211 = scalar_lea.vmem %s0, %s210
      %p212 = pneg %p49
      %p213 = pneg %p46
      %p214 = pneg %p70
      %p215 = pneg %p67
      %p216 = pneg %p91
      %p217 = pneg %p88
      %p218 = pneg %p112
      %p219 = pneg %p109
      %p220 = pneg %p133
      %p221 = pneg %p130
      %p222 = pneg %p161
      %p223 = pneg %p158
      %p224 = scmp.lt.s32.totalorder %s20, 1
      %s225 = scalar_select %p224, %s20, 1
      %p226 = scmp.lt.s32.totalorder %s21, 1
      %s227 = scalar_select %p226, %s21, 1
      %s228 = smul.addr %s225, 2
      %s229 = sadd.s32 %s227, %s228
      %s230 = smul.addr %s229, 8
      %s231 = scalar_lea.vmem %s5, %s230
      %p232 = scmp.lt.s32.totalorder %s20, 1
      %s233 = scalar_select %p232, %s20, 1
      %s234 = smul.addr %s233, 60
      %s235 = smul.addr %s234, 8
      %s236 = scalar_lea.vmem %s0, %s235
      %p237 = scmp.lt.s32.totalorder %s20, 1
      %s238 = scalar_select %p237, %s20, 1
      %p239 = scmp.lt.s32.totalorder %s21, 1
      %s240 = scalar_select %p239, %s21, 1
      %s241 = smul.addr %s238, 2
      %s242 = sadd.s32 %s240, %s241
      %s243 = smul.addr %s242, 8
      %s244 = scalar_lea.vmem %s5, %s243
      %s246 = smul.u32 %s21, 8
      %s247 = smul.u32 %s246, 24
      %s248 = scalar_lea.vmem %s236, %s247
      %v249 = vld [vmem:[%s248] sm:$0xff]
      %v250 = vld [vmem:[%s248 + $0x8] sm:$0xff]
      %v251 = vld [vmem:[%s248 + $0x10] sm:$0x3]
      %v252 = vld [vmem:[%s248 + $0x18] sm:$0xff]
      %v253 = vld [vmem:[%s248 + $0x20] sm:$0xff]
      %v254 = vld [vmem:[%s248 + $0x28] sm:$0x3]
      %v255 = vld [vmem:[%s248 + $0x30] sm:$0xff]
      %v256 = vld [vmem:[%s248 + $0x38] sm:$0xff]
      %v257 = vld [vmem:[%s248 + $0x40] sm:$0x3]
      %v258 = vld [vmem:[%s248 + $0x48] sm:$0xff]
      %v259 = vld [vmem:[%s248 + $0x50] sm:$0xff]
      %v260 = vld [vmem:[%s248 + $0x58] sm:$0x3]
      %v261 = vld [vmem:[%s248 + $0x60] sm:$0xff]
      %v262 = vld [vmem:[%s248 + $0x68] sm:$0xff]
      %v263 = vld [vmem:[%s248 + $0x70] sm:$0x3]
      %v264 = vld [vmem:[%s248 + $0x78] sm:$0xff]
      %v265 = vld [vmem:[%s248 + $0x80] sm:$0xff]
      %v266 = vld [vmem:[%s248 + $0x88] sm:$0x3]
      %v267 = vld [vmem:[%s248 + $0x90] sm:$0xff]
      %v268 = vld [vmem:[%s248 + $0x98] sm:$0xff]
      %v269 = vld [vmem:[%s248 + $0xa0] sm:$0x3]
      %v270 = vld [vmem:[%s248 + $0xa8] sm:$0xff]
      %v271 = vld [vmem:[%s248 + $0xb0] sm:$0xff]
      %v272 = vld [vmem:[%s248 + $0xb8] sm:$0x3]
      %v273 = vld [vmem:[%s248 + $0xc0] sm:$0xff]
      %v274 = vld [vmem:[%s248 + $0xc8] sm:$0xff]
      %v275 = vld [vmem:[%s248 + $0xd0] sm:$0x3]
      %v276 = vld [vmem:[%s248 + $0xd8] sm:$0xff]
      %v277 = vld [vmem:[%s248 + $0xe0] sm:$0xff]
      %v278 = vld [vmem:[%s248 + $0xe8] sm:$0x3]
      %v279 = vld [vmem:[%s248 + $0xf0] sm:$0xff]
      %v280 = vld [vmem:[%s248 + $0xf8] sm:$0xff]
      %v281 = vld [vmem:[%s248 + $0x100] sm:$0x3]
      %v282 = vld [vmem:[%s248 + $0x108] sm:$0xff]
      %v283 = vld [vmem:[%s248 + $0x110] sm:$0xff]
      %v284 = vld [vmem:[%s248 + $0x118] sm:$0x3]
      %vm315 = vcmask 1046528
      %v316 = vrot.slane %v249, 1
      %v317 = vrot.slane %v250, 1
      %v318 = vsel %vm315, %v316, %v317
      %v319 = vrot.slane %v251, 1
      %v320 = vsel %vm315, %v317, %v319
      %v321 = vrot.slane %v252, 1
      %v322 = vrot.slane %v253, 1
      %v323 = vsel %vm315, %v321, %v322
      %v324 = vrot.slane %v254, 1
      %v325 = vsel %vm315, %v322, %v324
      %v326 = vrot.slane %v255, 1
      %v327 = vrot.slane %v256, 1
      %v328 = vsel %vm315, %v326, %v327
      %v329 = vrot.slane %v257, 1
      %v330 = vsel %vm315, %v327, %v329
      %v331 = vrot.slane %v258, 1
      %v332 = vrot.slane %v259, 1
      %v333 = vsel %vm315, %v331, %v332
      %v334 = vrot.slane %v260, 1
      %v335 = vsel %vm315, %v332, %v334
      %v336 = vrot.slane %v261, 1
      %v337 = vrot.slane %v262, 1
      %v338 = vsel %vm315, %v336, %v337
      %v339 = vrot.slane %v263, 1
      %v340 = vsel %vm315, %v337, %v339
      %v341 = vrot.slane %v264, 1
      %v342 = vrot.slane %v265, 1
      %v343 = vsel %vm315, %v341, %v342
      %v344 = vrot.slane %v266, 1
      %v345 = vsel %vm315, %v342, %v344
      %v346 = vrot.slane %v267, 1
      %v347 = vrot.slane %v268, 1
      %v348 = vsel %vm315, %v346, %v347
      %v349 = vrot.slane %v269, 1
      %v350 = vsel %vm315, %v347, %v349
      %v351 = vrot.slane %v270, 1
      %v352 = vrot.slane %v271, 1
      %v353 = vsel %vm315, %v351, %v352
      %v354 = vrot.slane %v272, 1
      %v355 = vsel %vm315, %v352, %v354
      %v356 = vrot.slane %v273, 1
      %v357 = vrot.slane %v274, 1
      %v358 = vsel %vm315, %v356, %v357
      %v359 = vrot.slane %v275, 1
      %v360 = vsel %vm315, %v357, %v359
      %v361 = vrot.slane %v276, 1
      %v362 = vrot.slane %v277, 1
      %v363 = vsel %vm315, %v361, %v362
      %v364 = vrot.slane %v278, 1
      %v365 = vsel %vm315, %v362, %v364
      %366 = vrot.lane.b32.xlu0 %v318, 8
      %v367 = vpop.permute.xlu0 %366
      %368 = vrot.lane.b32.xlu0 %v320, 8
      %v369 = vpop.permute.xlu0 %368
      %370 = vrot.lane.b32.xlu0 %v323, 8
      %v371 = vpop.permute.xlu0 %370
      %372 = vrot.lane.b32.xlu0 %v325, 8
      %v373 = vpop.permute.xlu0 %372
      %374 = vrot.lane.b32.xlu0 %v328, 8
      %v375 = vpop.permute.xlu0 %374
      %376 = vrot.lane.b32.xlu0 %v330, 8
      %v377 = vpop.permute.xlu0 %376
      %378 = vrot.lane.b32.xlu0 %v333, 8
      %v379 = vpop.permute.xlu0 %378
      %380 = vrot.lane.b32.xlu0 %v335, 8
      %v381 = vpop.permute.xlu0 %380
      %382 = vrot.lane.b32.xlu0 %v338, 8
      %v383 = vpop.permute.xlu0 %382
      %384 = vrot.lane.b32.xlu0 %v340, 8
      %v385 = vpop.permute.xlu0 %384
      %386 = vrot.lane.b32.xlu0 %v343, 8
      %v387 = vpop.permute.xlu0 %386
      %388 = vrot.lane.b32.xlu0 %v345, 8
      %v389 = vpop.permute.xlu0 %388
      %390 = vrot.lane.b32.xlu0 %v348, 8
      %v391 = vpop.permute.xlu0 %390
      %392 = vrot.lane.b32.xlu0 %v350, 8
      %v393 = vpop.permute.xlu0 %392
      %394 = vrot.lane.b32.xlu0 %v353, 8
      %v395 = vpop.permute.xlu0 %394
      %396 = vrot.lane.b32.xlu0 %v355, 8
      %v397 = vpop.permute.xlu0 %396
      %398 = vrot.lane.b32.xlu0 %v358, 8
      %v399 = vpop.permute.xlu0 %398
      %400 = vrot.lane.b32.xlu0 %v360, 8
      %v401 = vpop.permute.xlu0 %400
      %402 = vrot.lane.b32.xlu0 %v363, 8
      %v403 = vpop.permute.xlu0 %402
      %404 = vrot.lane.b32.xlu0 %v365, 8
      %v405 = vpop.permute.xlu0 %404
      %vm426 = vcmask 1045504
      %v427 = vrot.slane %v249, 2
      %v428 = vrot.slane %v250, 2
      %v429 = vsel %vm426, %v427, %v428
      %v430 = vrot.slane %v251, 2
      %v431 = vsel %vm426, %v428, %v430
      %v432 = vrot.slane %v252, 2
      %v433 = vrot.slane %v253, 2
      %v434 = vsel %vm426, %v432, %v433
      %v435 = vrot.slane %v254, 2
      %v436 = vsel %vm426, %v433, %v435
      %v437 = vrot.slane %v255, 2
      %v438 = vrot.slane %v256, 2
      %v439 = vsel %vm426, %v437, %v438
      %v440 = vrot.slane %v257, 2
      %v441 = vsel %vm426, %v438, %v440
      %v442 = vrot.slane %v258, 2
      %v443 = vrot.slane %v259, 2
      %v444 = vsel %vm426, %v442, %v443
      %v445 = vrot.slane %v260, 2
      %v446 = vsel %vm426, %v443, %v445
      %v447 = vrot.slane %v261, 2
      %v448 = vrot.slane %v262, 2
      %v449 = vsel %vm426, %v447, %v448
      %v450 = vrot.slane %v263, 2
      %v451 = vsel %vm426, %v448, %v450
      %v452 = vrot.slane %v264, 2
      %v453 = vrot.slane %v265, 2
      %v454 = vsel %vm426, %v452, %v453
      %v455 = vrot.slane %v266, 2
      %v456 = vsel %vm426, %v453, %v455
      %v457 = vrot.slane %v267, 2
      %v458 = vrot.slane %v268, 2
      %v459 = vsel %vm426, %v457, %v458
      %v460 = vrot.slane %v269, 2
      %v461 = vsel %vm426, %v458, %v460
      %v462 = vrot.slane %v270, 2
      %v463 = vrot.slane %v271, 2
      %v464 = vsel %vm426, %v462, %v463
      %v465 = vrot.slane %v272, 2
      %v466 = vsel %vm426, %v463, %v465
      %v467 = vrot.slane %v273, 2
      %v468 = vrot.slane %v274, 2
      %v469 = vsel %vm426, %v467, %v468
      %v470 = vrot.slane %v275, 2
      %v471 = vsel %vm426, %v468, %v470
      %v472 = vrot.slane %v276, 2
      %v473 = vrot.slane %v277, 2
      %v474 = vsel %vm426, %v472, %v473
      %v475 = vrot.slane %v278, 2
      %v476 = vsel %vm426, %v473, %v475
      %477 = vrot.lane.b32.xlu0 %v429, 16
      %v478 = vpop.permute.xlu0 %477
      %479 = vrot.lane.b32.xlu0 %v431, 16
      %v480 = vpop.permute.xlu0 %479
      %481 = vrot.lane.b32.xlu0 %v434, 16
      %v482 = vpop.permute.xlu0 %481
      %483 = vrot.lane.b32.xlu0 %v436, 16
      %v484 = vpop.permute.xlu0 %483
      %485 = vrot.lane.b32.xlu0 %v439, 16
      %v486 = vpop.permute.xlu0 %485
      %487 = vrot.lane.b32.xlu0 %v441, 16
      %v488 = vpop.permute.xlu0 %487
      %489 = vrot.lane.b32.xlu0 %v444, 16
      %v490 = vpop.permute.xlu0 %489
      %491 = vrot.lane.b32.xlu0 %v446, 16
      %v492 = vpop.permute.xlu0 %491
      %493 = vrot.lane.b32.xlu0 %v449, 16
      %v494 = vpop.permute.xlu0 %493
      %495 = vrot.lane.b32.xlu0 %v451, 16
      %v496 = vpop.permute.xlu0 %495
      %497 = vrot.lane.b32.xlu0 %v454, 16
      %v498 = vpop.permute.xlu0 %497
      %499 = vrot.lane.b32.xlu0 %v456, 16
      %v500 = vpop.permute.xlu0 %499
      %501 = vrot.lane.b32.xlu0 %v459, 16
      %v502 = vpop.permute.xlu0 %501
      %503 = vrot.lane.b32.xlu0 %v461, 16
      %v504 = vpop.permute.xlu0 %503
      %505 = vrot.lane.b32.xlu0 %v464, 16
      %v506 = vpop.permute.xlu0 %505
      %507 = vrot.lane.b32.xlu0 %v466, 16
      %v508 = vpop.permute.xlu0 %507
      %509 = vrot.lane.b32.xlu0 %v469, 16
      %v510 = vpop.permute.xlu0 %509
      %511 = vrot.lane.b32.xlu0 %v471, 16
      %v512 = vpop.permute.xlu0 %511
      %513 = vrot.lane.b32.xlu0 %v474, 16
      %v514 = vpop.permute.xlu0 %513
      %515 = vrot.lane.b32.xlu0 %v476, 16
      %v516 = vpop.permute.xlu0 %515
      %vm537 = vcmask 64512
      %v538 = vsel %vm537, %v249, %v367
      %v539 = vsel %vm537, %v250, %v369
      %v540 = vsel %vm537, %v252, %v371
      %v541 = vsel %vm537, %v253, %v373
      %v542 = vsel %vm537, %v255, %v375
      %v543 = vsel %vm537, %v256, %v377
      %v544 = vsel %vm537, %v258, %v379
      %v545 = vsel %vm537, %v259, %v381
      %v546 = vsel %vm537, %v261, %v383
      %v547 = vsel %vm537, %v262, %v385
      %v548 = vsel %vm537, %v264, %v387
      %v549 = vsel %vm537, %v265, %v389
      %v550 = vsel %vm537, %v267, %v391
      %v551 = vsel %vm537, %v268, %v393
      %v552 = vsel %vm537, %v270, %v395
      %v553 = vsel %vm537, %v271, %v397
      %v554 = vsel %vm537, %v273, %v399
      %v555 = vsel %vm537, %v274, %v401
      %v556 = vsel %vm537, %v276, %v403
      %v557 = vsel %vm537, %v277, %v405
      %vm558 = vcmask 130048
      %v559 = vsel %vm558, %v538, %v478
      %v560 = vsel %vm558, %v539, %v480
      %v561 = vsel %vm558, %v540, %v482
      %v562 = vsel %vm558, %v541, %v484
      %v563 = vsel %vm558, %v542, %v486
      %v564 = vsel %vm558, %v543, %v488
      %v565 = vsel %vm558, %v544, %v490
      %v566 = vsel %vm558, %v545, %v492
      %v567 = vsel %vm558, %v546, %v494
      %v568 = vsel %vm558, %v547, %v496
      %v569 = vsel %vm558, %v548, %v498
      %v570 = vsel %vm558, %v549, %v500
      %v571 = vsel %vm558, %v550, %v502
      %v572 = vsel %vm558, %v551, %v504
      %v573 = vsel %vm558, %v552, %v506
      %v574 = vsel %vm558, %v553, %v508
      %v575 = vsel %vm558, %v554, %v510
      %v576 = vsel %vm558, %v555, %v512
      %v577 = vsel %vm558, %v556, %v514
      %v578 = vsel %vm558, %v557, %v516
      %v579 = vpack.c.bf16 %v560, %v559
      %v580 = vpack.c.bf16 %v562, %v561
      %v581 = vpack.c.bf16 %v564, %v563
      %v582 = vpack.c.bf16 %v566, %v565
      %v583 = vpack.c.bf16 %v568, %v567
      %v584 = vpack.c.bf16 %v570, %v569
      %v585 = vpack.c.bf16 %v572, %v571
      %v586 = vpack.c.bf16 %v574, %v573
      %v587 = vpack.c.bf16 %v576, %v575
      %v588 = vpack.c.bf16 %v578, %v577
      %v589 = vld [vmem:[%s1] sm:$0xf]
      %v590 = vld [vmem:[%s1 + $0x4] sm:$0xf]
      %v591 = vld [vmem:[%s1 + $0x8] sm:$0xf]
      %v595 = vrot.slane %v279, 1
      %v596 = vrot.slane %v280, 1
      %v597 = vsel %vm315, %v595, %v596
      %v598 = vrot.slane %v281, 1
      %v599 = vsel %vm315, %v596, %v598
      %600 = vrot.lane.b32.xlu0 %v597, 8
      %v601 = vpop.permute.xlu0 %600
      %602 = vrot.lane.b32.xlu0 %v599, 8
      %v603 = vpop.permute.xlu0 %602
      %v606 = vrot.slane %v279, 2
      %v607 = vrot.slane %v280, 2
      %v608 = vsel %vm426, %v606, %v607
      %v609 = vrot.slane %v281, 2
      %v610 = vsel %vm426, %v607, %v609
      %611 = vrot.lane.b32.xlu0 %v608, 16
      %v612 = vpop.permute.xlu0 %611
      %613 = vrot.lane.b32.xlu0 %v610, 16
      %v614 = vpop.permute.xlu0 %613
      %v617 = vsel %vm537, %v279, %v601
      %v618 = vsel %vm537, %v280, %v603
      %v619 = vsel %vm558, %v617, %v612
      %v620 = vsel %vm558, %v618, %v614
      %v621 = vpack.c.bf16 %v620, %v619
      %s622 = scalar_lea.vmem %s1, 12
      %v623 = vld [vmem:[%s622] sm:$0xf]
      %v624 = vld [vmem:[%s622 + $0x4] sm:$0xf]
      %v625 = vld [vmem:[%s622 + $0x8] sm:$0xf]
      %v629 = vunpack.c.l.b16 %v623
      %v630 = vunpack.c.l.b16 %v624
      %v631 = vunpack.c.l.b16 %v625
      %v632 = vpack.c.b16 %v630, %v629
      %v633 = vpack.c.b16 %v631, %v631
      %vm635 = vcmask 195584
      %v637 = vsel %vm635, %v580, 0
      %v640 = vsel %vm635, %v581, 0
      %v643 = vsel %vm635, %v582, 0
      %v646 = vsel %vm635, %v583, 0
      %v649 = vsel %vm635, %v584, 0
      %v652 = vsel %vm635, %v585, 0
      %v655 = vsel %vm635, %v586, 0
      %v658 = vsel %vm635, %v587, 0
      %v661 = vsel %vm635, %v588, 0
      %v664 = vsel %vm635, %v621, 0
      %vm666 = vcmask 1043456
      %v668 = vsel %vm666, %v633, 0
      %670 = vmatprep.subr.bf16.mxu0 0
      %671 = vmatpush1.bf16.msra.mxu0 0
      %672 = vmatprep.subr.bf16.mxu0 0
      %673 = vmatpush1.bf16.msra.mxu0 0
      %674 = vmatprep.subr.bf16.mxu0 0
      %675 = vmatpush1.bf16.msra.mxu0 0
      %676 = vmatprep.subr.bf16.mxu0 0
      %677 = vmatpush1.bf16.msra.mxu0 0
      %678 = vmatprep.subr.bf16.mxu0 0
      %679 = vmatpush1.bf16.msra.mxu0 0
      %680 = vmatprep.subr.bf16.mxu0 0
      %681 = vmatpush1.bf16.msra.mxu0 0
      %682 = vmatprep.subr.bf16.mxu0 0
      %683 = vmatpush1.bf16.msra.mxu0 %v668
      %684 = vmatprep.subr.bf16.mxu0 0
      %685 = vmatpush1.bf16.msra.mxu0 %v632
      %686 = vmatprep.subr.bf16.mxu0 0
      %687 = vmatpush2.bf16.msra.mxu0 0
      %688 = vmatprep.subr.bf16.mxu0 0
      %689 = vmatpush2.bf16.msra.mxu0 0
      %690 = vmatprep.subr.bf16.mxu0 0
      %691 = vmatpush2.bf16.msra.mxu0 0
      %692 = vmatprep.subr.bf16.mxu0 0
      %693 = vmatpush2.bf16.msra.mxu0 0
      %694 = vmatprep.subr.bf16.mxu0 0
      %695 = vmatpush2.bf16.msra.mxu0 0
      %696 = vmatprep.subr.bf16.mxu0 0
      %697 = vmatpush2.bf16.msra.mxu0 0
      %698 = vmatprep.subr.bf16.mxu0 0
      %699 = vmatpush2.bf16.msra.mxu0 0
      %700 = vmatprep.subr.bf16.mxu0 0
      %701 = vmatpush2.bf16.msra.mxu0 0
      %702 = vmatprep.mubr.bf16.mxu0 0
      %703 = vmatmul.mubr.bf16.gmra.mxu0 %v637
      %v704 = vpop.f32.mrf.mxu0
      %v705 = vadd.f32 0.0, %v704
      %v706 = vpop.f32.mrf.mxu0
      %v707 = vpop.f32.mrf.mxu0
      %v708 = vadd.f32 0.0, %v707
      %v709 = vpop.f32.mrf.mxu0
      %710 = vmatprep.mubr.bf16.mxu0 0
      %711 = vmatmul.mubr.bf16.gmra.mxu0 %v640
      %v712 = vpop.f32.mrf.mxu0
      %v713 = vadd.f32 0.0, %v712
      %v714 = vpop.f32.mrf.mxu0
      %v715 = vpop.f32.mrf.mxu0
      %v716 = vadd.f32 0.0, %v715
      %v717 = vpop.f32.mrf.mxu0
      %718 = vmatprep.mubr.bf16.mxu0 0
      %719 = vmatmul.mubr.bf16.gmra.mxu0 %v643
      %v720 = vpop.f32.mrf.mxu0
      %v721 = vadd.f32 0.0, %v720
      %v722 = vpop.f32.mrf.mxu0
      %v723 = vpop.f32.mrf.mxu0
      %v724 = vadd.f32 0.0, %v723
      %v725 = vpop.f32.mrf.mxu0
      %726 = vmatprep.mubr.bf16.mxu0 0
      %727 = vmatmul.mubr.bf16.gmra.mxu0 %v646
      %v728 = vpop.f32.mrf.mxu0
      %v729 = vadd.f32 0.0, %v728
      %v730 = vpop.f32.mrf.mxu0
      %v731 = vpop.f32.mrf.mxu0
      %v732 = vadd.f32 0.0, %v731
      %v733 = vpop.f32.mrf.mxu0
      %734 = vmatprep.mubr.bf16.mxu0 0
      %735 = vmatmul.mubr.bf16.gmra.mxu0 %v649
      %v736 = vpop.f32.mrf.mxu0
      %v737 = vadd.f32 0.0, %v736
      %v738 = vpop.f32.mrf.mxu0
      %v739 = vpop.f32.mrf.mxu0
      %v740 = vadd.f32 0.0, %v739
      %v741 = vpop.f32.mrf.mxu0
      %742 = vmatprep.mubr.bf16.mxu0 0
      %743 = vmatmul.mubr.bf16.gmra.mxu0 %v652
      %v744 = vpop.f32.mrf.mxu0
      %v745 = vadd.f32 0.0, %v744
      %v746 = vpop.f32.mrf.mxu0
      %v747 = vpop.f32.mrf.mxu0
      %v748 = vadd.f32 0.0, %v747
      %v749 = vpop.f32.mrf.mxu0
      %750 = vmatprep.mubr.bf16.mxu0 0
      %751 = vmatmul.mubr.bf16.gmra.mxu0 %v655
      %v752 = vpop.f32.mrf.mxu0
      %v753 = vadd.f32 0.0, %v752
      %v754 = vpop.f32.mrf.mxu0
      %v755 = vpop.f32.mrf.mxu0
      %v756 = vadd.f32 0.0, %v755
      %v757 = vpop.f32.mrf.mxu0
      %758 = vmatprep.mubr.bf16.mxu0 0
      %759 = vmatmul.mubr.bf16.gmra.mxu0 %v658
      %v760 = vpop.f32.mrf.mxu0
      %v761 = vadd.f32 0.0, %v760
      %v762 = vpop.f32.mrf.mxu0
      %v763 = vpop.f32.mrf.mxu0
      %v764 = vadd.f32 0.0, %v763
      %v765 = vpop.f32.mrf.mxu0
      %766 = vmatprep.mubr.bf16.mxu0 0
      %767 = vmatmul.mubr.bf16.gmra.mxu0 %v661
      %v768 = vpop.f32.mrf.mxu0
      %v769 = vadd.f32 0.0, %v768
      %v770 = vpop.f32.mrf.mxu0
      %v771 = vpop.f32.mrf.mxu0
      %v772 = vadd.f32 0.0, %v771
      %v773 = vpop.f32.mrf.mxu0
      %774 = vmatprep.mubr.bf16.mxu0 0
      %775 = vmatmul.mubr.bf16.gmra.mxu0 %v664
      %v776 = vpop.f32.mrf.mxu0
      %v777 = vadd.f32 0.0, %v776
      %v778 = vpop.f32.mrf.mxu0
      %v779 = vpop.f32.mrf.mxu0
      %v780 = vadd.f32 0.0, %v779
      %v781 = vpop.f32.mrf.mxu0
      %782 = vdwg.mxu0
      %v786 = vunpack.c.l.b16 %v589
      %v787 = vunpack.c.l.b16 %v590
      %v788 = vunpack.c.l.b16 %v591
      %v789 = vpack.c.b16 %v787, %v786
      %v790 = vpack.c.b16 %v788, %v788
      %v793 = vsel %vm635, %v579, 0
      %v796 = vsel %vm666, %v790, 0
      %798 = vmatprep.subr.bf16.mxu0 0
      %799 = vmatpush1.bf16.msra.mxu0 0
      %800 = vmatprep.subr.bf16.mxu0 0
      %801 = vmatpush1.bf16.msra.mxu0 0
      %802 = vmatprep.subr.bf16.mxu0 0
      %803 = vmatpush1.bf16.msra.mxu0 0
      %804 = vmatprep.subr.bf16.mxu0 0
      %805 = vmatpush1.bf16.msra.mxu0 0
      %806 = vmatprep.subr.bf16.mxu0 0
      %807 = vmatpush1.bf16.msra.mxu0 0
      %808 = vmatprep.subr.bf16.mxu0 0
      %809 = vmatpush1.bf16.msra.mxu0 0
      %810 = vmatprep.subr.bf16.mxu0 0
      %811 = vmatpush1.bf16.msra.mxu0 %v796
      %812 = vmatprep.subr.bf16.mxu0 0
      %813 = vmatpush1.bf16.msra.mxu0 %v789
      %814 = vmatprep.subr.bf16.mxu0 0
      %815 = vmatpush2.bf16.msra.mxu0 0
      %816 = vmatprep.subr.bf16.mxu0 0
      %817 = vmatpush2.bf16.msra.mxu0 0
      %818 = vmatprep.subr.bf16.mxu0 0
      %819 = vmatpush2.bf16.msra.mxu0 0
      %820 = vmatprep.subr.bf16.mxu0 0
      %821 = vmatpush2.bf16.msra.mxu0 0
      %822 = vmatprep.subr.bf16.mxu0 0
      %823 = vmatpush2.bf16.msra.mxu0 0
      %824 = vmatprep.subr.bf16.mxu0 0
      %825 = vmatpush2.bf16.msra.mxu0 0
      %826 = vmatprep.subr.bf16.mxu0 0
      %827 = vmatpush2.bf16.msra.mxu0 0
      %828 = vmatprep.subr.bf16.mxu0 0
      %829 = vmatpush2.bf16.msra.mxu0 0
      %830 = vmatprep.mubr.bf16.mxu0 0
      %831 = vmatmul.mubr.bf16.gmra.mxu0 %v793
      %v832 = vpop.f32.mrf.mxu0
      %v833 = vadd.f32 %v705, %v832
      %v834 = vpop.f32.mrf.mxu0
      %v835 = vpop.f32.mrf.mxu0
      %v836 = vadd.f32 %v708, %v835
      %v837 = vpop.f32.mrf.mxu0
      %838 = vmatprep.mubr.bf16.mxu0 0
      %839 = vmatmul.mubr.bf16.gmra.mxu0 %v637
      %v840 = vpop.f32.mrf.mxu0
      %v841 = vadd.f32 %v713, %v840
      %v842 = vpop.f32.mrf.mxu0
      %v843 = vpop.f32.mrf.mxu0
      %v844 = vadd.f32 %v716, %v843
      %v845 = vpop.f32.mrf.mxu0
      %846 = vmatprep.mubr.bf16.mxu0 0
      %847 = vmatmul.mubr.bf16.gmra.mxu0 %v640
      %v848 = vpop.f32.mrf.mxu0
      %v849 = vadd.f32 %v721, %v848
      %v850 = vpop.f32.mrf.mxu0
      %v851 = vpop.f32.mrf.mxu0
      %v852 = vadd.f32 %v724, %v851
      %v853 = vpop.f32.mrf.mxu0
      %854 = vmatprep.mubr.bf16.mxu0 0
      %855 = vmatmul.mubr.bf16.gmra.mxu0 %v643
      %v856 = vpop.f32.mrf.mxu0
      %v857 = vadd.f32 %v729, %v856
      %v858 = vpop.f32.mrf.mxu0
      %v859 = vpop.f32.mrf.mxu0
      %v860 = vadd.f32 %v732, %v859
      %v861 = vpop.f32.mrf.mxu0
      %862 = vmatprep.mubr.bf16.mxu0 0
      %863 = vmatmul.mubr.bf16.gmra.mxu0 %v646
      %v864 = vpop.f32.mrf.mxu0
      %v865 = vadd.f32 %v737, %v864
      %v866 = vpop.f32.mrf.mxu0
      %v867 = vpop.f32.mrf.mxu0
      %v868 = vadd.f32 %v740, %v867
      %v869 = vpop.f32.mrf.mxu0
      %870 = vmatprep.mubr.bf16.mxu0 0
      %871 = vmatmul.mubr.bf16.gmra.mxu0 %v649
      %v872 = vpop.f32.mrf.mxu0
      %v873 = vadd.f32 %v745, %v872
      %v874 = vpop.f32.mrf.mxu0
      %v875 = vpop.f32.mrf.mxu0
      %v876 = vadd.f32 %v748, %v875
      %v877 = vpop.f32.mrf.mxu0
      %878 = vmatprep.mubr.bf16.mxu0 0
      %879 = vmatmul.mubr.bf16.gmra.mxu0 %v652
      %v880 = vpop.f32.mrf.mxu0
      %v881 = vadd.f32 %v753, %v880
      %v882 = vpop.f32.mrf.mxu0
      %v883 = vpop.f32.mrf.mxu0
      %v884 = vadd.f32 %v756, %v883
      %v885 = vpop.f32.mrf.mxu0
      %886 = vmatprep.mubr.bf16.mxu0 0
      %887 = vmatmul.mubr.bf16.gmra.mxu0 %v655
      %v888 = vpop.f32.mrf.mxu0
      %v889 = vadd.f32 %v761, %v888
      %v890 = vpop.f32.mrf.mxu0
      %v891 = vpop.f32.mrf.mxu0
      %v892 = vadd.f32 %v764, %v891
      %v893 = vpop.f32.mrf.mxu0
      %894 = vmatprep.mubr.bf16.mxu0 0
      %895 = vmatmul.mubr.bf16.gmra.mxu0 %v658
      %v896 = vpop.f32.mrf.mxu0
      %v897 = vadd.f32 %v769, %v896
      %v898 = vpop.f32.mrf.mxu0
      %v899 = vpop.f32.mrf.mxu0
      %v900 = vadd.f32 %v772, %v899
      %v901 = vpop.f32.mrf.mxu0
      %902 = vmatprep.mubr.bf16.mxu0 0
      %903 = vmatmul.mubr.bf16.gmra.mxu0 %v661
      %v904 = vpop.f32.mrf.mxu0
      %v905 = vadd.f32 %v777, %v904
      %v906 = vpop.f32.mrf.mxu0
      %v907 = vpop.f32.mrf.mxu0
      %v908 = vadd.f32 %v780, %v907
      %v909 = vpop.f32.mrf.mxu0
      %910 = vdwg.mxu0
      %v914 = vrot.slane %v282, 1
      %v915 = vrot.slane %v283, 1
      %v916 = vsel %vm315, %v914, %v915
      %v917 = vrot.slane %v284, 1
      %v918 = vsel %vm315, %v915, %v917
      %919 = vrot.lane.b32.xlu0 %v916, 8
      %v920 = vpop.permute.xlu0 %919
      %921 = vrot.lane.b32.xlu0 %v918, 8
      %v922 = vpop.permute.xlu0 %921
      %v925 = vrot.slane %v282, 2
      %v926 = vrot.slane %v283, 2
      %v927 = vsel %vm426, %v925, %v926
      %v928 = vrot.slane %v284, 2
      %v929 = vsel %vm426, %v926, %v928
      %930 = vrot.lane.b32.xlu0 %v927, 16
      %v931 = vpop.permute.xlu0 %930
      %932 = vrot.lane.b32.xlu0 %v929, 16
      %v933 = vpop.permute.xlu0 %932
      %v936 = vsel %vm537, %v282, %v920
      %v937 = vsel %vm537, %v283, %v922
      %v938 = vsel %vm558, %v936, %v931
      %v939 = vsel %vm558, %v937, %v933
      %v940 = vpack.c.bf16 %v939, %v938
      %s941 = scalar_lea.vmem %s1, 24
      %v942 = vld [vmem:[%s941] sm:$0xf]
      %v943 = vld [vmem:[%s941 + $0x4] sm:$0xf]
      %v944 = vld [vmem:[%s941 + $0x8] sm:$0xf]
      %v948 = vunpack.c.l.b16 %v942
      %v949 = vunpack.c.l.b16 %v943
      %v950 = vunpack.c.l.b16 %v944
      %v951 = vpack.c.b16 %v949, %v948
      %v952 = vpack.c.b16 %v950, %v950
      %v955 = vsel %vm635, %v940, 0
      %v958 = vsel %vm666, %v952, 0
      %960 = vmatprep.subr.bf16.mxu0 0
      %961 = vmatpush1.bf16.msra.mxu0 0
      %962 = vmatprep.subr.bf16.mxu0 0
      %963 = vmatpush1.bf16.msra.mxu0 0
      %964 = vmatprep.subr.bf16.mxu0 0
      %965 = vmatpush1.bf16.msra.mxu0 0
      %966 = vmatprep.subr.bf16.mxu0 0
      %967 = vmatpush1.bf16.msra.mxu0 0
      %968 = vmatprep.subr.bf16.mxu0 0
      %969 = vmatpush1.bf16.msra.mxu0 0
      %970 = vmatprep.subr.bf16.mxu0 0
      %971 = vmatpush1.bf16.msra.mxu0 0
      %972 = vmatprep.subr.bf16.mxu0 0
      %973 = vmatpush1.bf16.msra.mxu0 %v958
      %974 = vmatprep.subr.bf16.mxu0 0
      %975 = vmatpush1.bf16.msra.mxu0 %v951
      %976 = vmatprep.subr.bf16.mxu0 0
      %977 = vmatpush2.bf16.msra.mxu0 0
      %978 = vmatprep.subr.bf16.mxu0 0
      %979 = vmatpush2.bf16.msra.mxu0 0
      %980 = vmatprep.subr.bf16.mxu0 0
      %981 = vmatpush2.bf16.msra.mxu0 0
      %982 = vmatprep.subr.bf16.mxu0 0
      %983 = vmatpush2.bf16.msra.mxu0 0
      %984 = vmatprep.subr.bf16.mxu0 0
      %985 = vmatpush2.bf16.msra.mxu0 0
      %986 = vmatprep.subr.bf16.mxu0 0
      %987 = vmatpush2.bf16.msra.mxu0 0
      %988 = vmatprep.subr.bf16.mxu0 0
      %989 = vmatpush2.bf16.msra.mxu0 0
      %990 = vmatprep.subr.bf16.mxu0 0
      %991 = vmatpush2.bf16.msra.mxu0 0
      %992 = vmatprep.mubr.bf16.mxu0 0
      %993 = vmatmul.mubr.bf16.gmra.mxu0 %v640
      %v994 = vpop.f32.mrf.mxu0
      %v995 = vadd.f32 0.0, %v994
      %v996 = vpop.f32.mrf.mxu0
      %v997 = vpop.f32.mrf.mxu0
      %v998 = vadd.f32 0.0, %v997
      %v999 = vpop.f32.mrf.mxu0
      %1000 = vmatprep.mubr.bf16.mxu0 0
      %1001 = vmatmul.mubr.bf16.gmra.mxu0 %v643
      %v1002 = vpop.f32.mrf.mxu0
      %v1003 = vadd.f32 0.0, %v1002
      %v1004 = vpop.f32.mrf.mxu0
      %v1005 = vpop.f32.mrf.mxu0
      %v1006 = vadd.f32 0.0, %v1005
      %v1007 = vpop.f32.mrf.mxu0
      %1008 = vmatprep.mubr.bf16.mxu0 0
      %1009 = vmatmul.mubr.bf16.gmra.mxu0 %v646
      %v1010 = vpop.f32.mrf.mxu0
      %v1011 = vadd.f32 0.0, %v1010
      %v1012 = vpop.f32.mrf.mxu0
      %v1013 = vpop.f32.mrf.mxu0
      %v1014 = vadd.f32 0.0, %v1013
      %v1015 = vpop.f32.mrf.mxu0
      %1016 = vmatprep.mubr.bf16.mxu0 0
      %1017 = vmatmul.mubr.bf16.gmra.mxu0 %v649
      %v1018 = vpop.f32.mrf.mxu0
      %v1019 = vadd.f32 0.0, %v1018
      %v1020 = vpop.f32.mrf.mxu0
      %v1021 = vpop.f32.mrf.mxu0
      %v1022 = vadd.f32 0.0, %v1021
      %v1023 = vpop.f32.mrf.mxu0
      %1024 = vmatprep.mubr.bf16.mxu0 0
      %1025 = vmatmul.mubr.bf16.gmra.mxu0 %v652
      %v1026 = vpop.f32.mrf.mxu0
      %v1027 = vadd.f32 0.0, %v1026
      %v1028 = vpop.f32.mrf.mxu0
      %v1029 = vpop.f32.mrf.mxu0
      %v1030 = vadd.f32 0.0, %v1029
      %v1031 = vpop.f32.mrf.mxu0
      %1032 = vmatprep.mubr.bf16.mxu0 0
      %1033 = vmatmul.mubr.bf16.gmra.mxu0 %v655
      %v1034 = vpop.f32.mrf.mxu0
      %v1035 = vadd.f32 0.0, %v1034
      %v1036 = vpop.f32.mrf.mxu0
      %v1037 = vpop.f32.mrf.mxu0
      %v1038 = vadd.f32 0.0, %v1037
      %v1039 = vpop.f32.mrf.mxu0
      %1040 = vmatprep.mubr.bf16.mxu0 0
      %1041 = vmatmul.mubr.bf16.gmra.mxu0 %v658
      %v1042 = vpop.f32.mrf.mxu0
      %v1043 = vadd.f32 0.0, %v1042
      %v1044 = vpop.f32.mrf.mxu0
      %v1045 = vpop.f32.mrf.mxu0
      %v1046 = vadd.f32 0.0, %v1045
      %v1047 = vpop.f32.mrf.mxu0
      %1048 = vmatprep.mubr.bf16.mxu0 0
      %1049 = vmatmul.mubr.bf16.gmra.mxu0 %v661
      %v1050 = vpop.f32.mrf.mxu0
      %v1051 = vadd.f32 0.0, %v1050
      %v1052 = vpop.f32.mrf.mxu0
      %v1053 = vpop.f32.mrf.mxu0
      %v1054 = vadd.f32 0.0, %v1053
      %v1055 = vpop.f32.mrf.mxu0
      %1056 = vmatprep.mubr.bf16.mxu0 0
      %1057 = vmatmul.mubr.bf16.gmra.mxu0 %v664
      %v1058 = vpop.f32.mrf.mxu0
      %v1059 = vadd.f32 0.0, %v1058
      %v1060 = vpop.f32.mrf.mxu0
      %v1061 = vpop.f32.mrf.mxu0
      %v1062 = vadd.f32 0.0, %v1061
      %v1063 = vpop.f32.mrf.mxu0
      %1064 = vmatprep.mubr.bf16.mxu0 0
      %1065 = vmatmul.mubr.bf16.gmra.mxu0 %v955
      %v1066 = vpop.f32.mrf.mxu0
      %v1067 = vadd.f32 0.0, %v1066
      %v1068 = vpop.f32.mrf.mxu0
      %v1069 = vpop.f32.mrf.mxu0
      %v1070 = vadd.f32 0.0, %v1069
      %v1071 = vpop.f32.mrf.mxu0
      %1072 = vdwg.mxu0
      %v1073 = vadd.f32 %v833, %v995
      %v1074 = vadd.f32 %v836, %v998
      %v1075 = vadd.f32 %v841, %v1003
      %v1076 = vadd.f32 %v844, %v1006
      %v1077 = vadd.f32 %v849, %v1011
      %v1078 = vadd.f32 %v852, %v1014
      %v1079 = vadd.f32 %v857, %v1019
      %v1080 = vadd.f32 %v860, %v1022
      %v1081 = vadd.f32 %v865, %v1027
      %v1082 = vadd.f32 %v868, %v1030
      %v1083 = vadd.f32 %v873, %v1035
      %v1084 = vadd.f32 %v876, %v1038
      %v1085 = vadd.f32 %v881, %v1043
      %v1086 = vadd.f32 %v884, %v1046
      %v1087 = vadd.f32 %v889, %v1051
      %v1088 = vadd.f32 %v892, %v1054
      %v1089 = vadd.f32 %v897, %v1059
      %v1090 = vadd.f32 %v900, %v1062
      %v1091 = vadd.f32 %v905, %v1067
      %v1092 = vadd.f32 %v908, %v1070
      %v1093 = vld [vmem:[%s2] sm:$0x1]
      %v1095 = vlaneseq
      %v1096 = vshrl.u32 %v1095, 7
      %v1097 = vsub.s32 0, %v1096
      %v1098 = vrot.slane %v1093, %v1097
      %v1100 = vadd.f32 %v1073, %v1098
      %v1101 = vadd.f32 %v1074, %v1098
      %v1102 = vadd.f32 %v1075, %v1098
      %v1103 = vadd.f32 %v1076, %v1098
      %v1104 = vadd.f32 %v1077, %v1098
      %v1105 = vadd.f32 %v1078, %v1098
      %v1106 = vadd.f32 %v1079, %v1098
      %v1107 = vadd.f32 %v1080, %v1098
      %v1108 = vadd.f32 %v1081, %v1098
      %v1109 = vadd.f32 %v1082, %v1098
      %v1110 = vadd.f32 %v1083, %v1098
      %v1111 = vadd.f32 %v1084, %v1098
      %v1112 = vadd.f32 %v1085, %v1098
      %v1113 = vadd.f32 %v1086, %v1098
      %v1114 = vadd.f32 %v1087, %v1098
      %v1115 = vadd.f32 %v1088, %v1098
      %v1116 = vadd.f32 %v1089, %v1098
      %v1117 = vadd.f32 %v1090, %v1098
      %v1118 = vadd.f32 %v1091, %v1098
      %v1119 = vadd.f32 %v1092, %v1098
      %v1120 = vmax.f32 %v1100, 0.0
      %v1121 = vmax.f32 %v1101, 0.0
      %v1122 = vmax.f32 %v1102, 0.0
      %v1123 = vmax.f32 %v1103, 0.0
      %v1124 = vmax.f32 %v1104, 0.0
      %v1125 = vmax.f32 %v1105, 0.0
      %v1126 = vmax.f32 %v1106, 0.0
      %v1127 = vmax.f32 %v1107, 0.0
      %v1128 = vmax.f32 %v1108, 0.0
      %v1129 = vmax.f32 %v1109, 0.0
      %v1130 = vmax.f32 %v1110, 0.0
      %v1131 = vmax.f32 %v1111, 0.0
      %v1132 = vmax.f32 %v1112, 0.0
      %v1133 = vmax.f32 %v1113, 0.0
      %v1134 = vmax.f32 %v1114, 0.0
      %v1135 = vmax.f32 %v1115, 0.0
      %v1136 = vmax.f32 %v1116, 0.0
      %v1137 = vmax.f32 %v1117, 0.0
      %v1138 = vmax.f32 %v1118, 0.0
      %v1139 = vmax.f32 %v1119, 0.0
      %v1140 = vpack.c.bf16 %v1121, %v1120
      %v1141 = vpack.c.bf16 %v1123, %v1122
      %v1142 = vpack.c.bf16 %v1125, %v1124
      %v1143 = vpack.c.bf16 %v1127, %v1126
      %v1144 = vpack.c.bf16 %v1129, %v1128
      %v1145 = vpack.c.bf16 %v1131, %v1130
      %v1146 = vpack.c.bf16 %v1133, %v1132
      %v1147 = vpack.c.bf16 %v1135, %v1134
      %v1148 = vpack.c.bf16 %v1137, %v1136
      %v1149 = vpack.c.bf16 %v1139, %v1138
      %v1160 = vunpack.c.l.b16 %v1140
      %v1161 = vunpack.c.h.b16 %v1140
      %v1162 = vunpack.c.l.b16 %v1141
      %v1163 = vunpack.c.h.b16 %v1141
      %v1164 = vunpack.c.l.b16 %v1142
      %v1165 = vunpack.c.h.b16 %v1142
      %v1166 = vunpack.c.l.b16 %v1143
      %v1167 = vunpack.c.h.b16 %v1143
      %v1168 = vunpack.c.l.b16 %v1144
      %v1169 = vunpack.c.h.b16 %v1144
      %v1170 = vunpack.c.l.b16 %v1145
      %v1171 = vunpack.c.h.b16 %v1145
      %v1172 = vunpack.c.l.b16 %v1146
      %v1173 = vunpack.c.h.b16 %v1146
      %v1174 = vunpack.c.l.b16 %v1147
      %v1175 = vunpack.c.h.b16 %v1147
      %v1176 = vunpack.c.l.b16 %v1148
      %v1177 = vunpack.c.h.b16 %v1148
      %v1178 = vunpack.c.l.b16 %v1149
      %v1179 = vunpack.c.h.b16 %v1149
      %v1180 = vpack.c.b16 %v1160, %v1160
      %v1181 = vpack.c.b16 %v1161, %v1161
      %v1182 = vpack.c.b16 %v1162, %v1162
      %v1183 = vpack.c.b16 %v1163, %v1163
      %v1184 = vpack.c.b16 %v1164, %v1164
      %v1185 = vpack.c.b16 %v1165, %v1165
      %v1186 = vpack.c.b16 %v1166, %v1166
      %v1187 = vpack.c.b16 %v1167, %v1167
      %v1188 = vpack.c.b16 %v1168, %v1168
      %v1189 = vpack.c.b16 %v1169, %v1169
      %v1190 = vpack.c.b16 %v1170, %v1170
      %v1191 = vpack.c.b16 %v1171, %v1171
      %v1192 = vpack.c.b16 %v1172, %v1172
      %v1193 = vpack.c.b16 %v1173, %v1173
      %v1194 = vpack.c.b16 %v1174, %v1174
      %v1195 = vpack.c.b16 %v1175, %v1175
      %v1196 = vpack.c.b16 %v1176, %v1176
      %v1197 = vpack.c.b16 %v1177, %v1177
      %v1198 = vpack.c.b16 %v1178, %v1178
      %v1199 = vpack.c.b16 %v1179, %v1179
      %vm1200 = vsmask.f32 256
      %vm1201 = vsmask.f32 4368
      %vm1202 = vmor %vm1200, %vm1201
      %v1204 = vshrl.u32 %v1180, 16
      %v1206 = vrot.slane %v1204, 7
      %v1207 = vshll.u32 %v1180, 16
      %v1209 = vor.u32 %v1206, %v1207
      %v1210 = vrot.slane %v1206, 4
      %v1212 = vshrl.u32 %v1181, 16
      %v1214 = vrot.slane %v1212, 7
      %v1215 = vshll.u32 %v1181, 16
      %v1217 = vor.u32 %v1214, %v1215
      %v1218 = vsel %vm1202, %v1210, %v1217
      %v1219 = vrot.slane %v1214, 4
      %v1221 = vshrl.u32 %v1182, 16
      %v1223 = vrot.slane %v1221, 7
      %v1224 = vshll.u32 %v1182, 16
      %v1226 = vor.u32 %v1223, %v1224
      %v1227 = vrot.slane %v1223, 4
      %v1229 = vshrl.u32 %v1183, 16
      %v1231 = vrot.slane %v1229, 7
      %v1232 = vshll.u32 %v1183, 16
      %v1234 = vor.u32 %v1231, %v1232
      %v1235 = vsel %vm1202, %v1227, %v1234
      %v1236 = vrot.slane %v1231, 4
      %v1238 = vshrl.u32 %v1184, 16
      %v1240 = vrot.slane %v1238, 7
      %v1241 = vshll.u32 %v1184, 16
      %v1243 = vor.u32 %v1240, %v1241
      %v1244 = vrot.slane %v1240, 4
      %v1246 = vshrl.u32 %v1185, 16
      %v1248 = vrot.slane %v1246, 7
      %v1249 = vshll.u32 %v1185, 16
      %v1251 = vor.u32 %v1248, %v1249
      %v1252 = vsel %vm1202, %v1244, %v1251
      %v1253 = vrot.slane %v1248, 4
      %v1255 = vshrl.u32 %v1186, 16
      %v1257 = vrot.slane %v1255, 7
      %v1258 = vshll.u32 %v1186, 16
      %v1260 = vor.u32 %v1257, %v1258
      %v1261 = vrot.slane %v1257, 4
      %v1263 = vshrl.u32 %v1187, 16
      %v1265 = vrot.slane %v1263, 7
      %v1266 = vshll.u32 %v1187, 16
      %v1268 = vor.u32 %v1265, %v1266
      %v1269 = vsel %vm1202, %v1261, %v1268
      %v1270 = vrot.slane %v1265, 4
      %v1272 = vshrl.u32 %v1188, 16
      %v1274 = vrot.slane %v1272, 7
      %v1275 = vshll.u32 %v1188, 16
      %v1277 = vor.u32 %v1274, %v1275
      %v1278 = vrot.slane %v1274, 4
      %v1280 = vshrl.u32 %v1189, 16
      %v1282 = vrot.slane %v1280, 7
      %v1283 = vshll.u32 %v1189, 16
      %v1285 = vor.u32 %v1282, %v1283
      %v1286 = vsel %vm1202, %v1278, %v1285
      %v1287 = vrot.slane %v1282, 4
      %v1289 = vshrl.u32 %v1190, 16
      %v1291 = vrot.slane %v1289, 7
      %v1292 = vshll.u32 %v1190, 16
      %v1294 = vor.u32 %v1291, %v1292
      %v1295 = vrot.slane %v1291, 4
      %v1297 = vshrl.u32 %v1191, 16
      %v1299 = vrot.slane %v1297, 7
      %v1300 = vshll.u32 %v1191, 16
      %v1302 = vor.u32 %v1299, %v1300
      %v1303 = vsel %vm1202, %v1295, %v1302
      %v1304 = vrot.slane %v1299, 4
      %v1306 = vshrl.u32 %v1192, 16
      %v1308 = vrot.slane %v1306, 7
      %v1309 = vshll.u32 %v1192, 16
      %v1311 = vor.u32 %v1308, %v1309
      %v1312 = vrot.slane %v1308, 4
      %v1314 = vshrl.u32 %v1193, 16
      %v1316 = vrot.slane %v1314, 7
      %v1317 = vshll.u32 %v1193, 16
      %v1319 = vor.u32 %v1316, %v1317
      %v1320 = vsel %vm1202, %v1312, %v1319
      %v1321 = vrot.slane %v1316, 4
      %v1323 = vshrl.u32 %v1194, 16
      %v1325 = vrot.slane %v1323, 7
      %v1326 = vshll.u32 %v1194, 16
      %v1328 = vor.u32 %v1325, %v1326
      %v1329 = vrot.slane %v1325, 4
      %v1331 = vshrl.u32 %v1195, 16
      %v1333 = vrot.slane %v1331, 7
      %v1334 = vshll.u32 %v1195, 16
      %v1336 = vor.u32 %v1333, %v1334
      %v1337 = vsel %vm1202, %v1329, %v1336
      %v1338 = vrot.slane %v1333, 4
      %v1340 = vshrl.u32 %v1196, 16
      %v1342 = vrot.slane %v1340, 7
      %v1343 = vshll.u32 %v1196, 16
      %v1345 = vor.u32 %v1342, %v1343
      %v1346 = vrot.slane %v1342, 4
      %v1348 = vshrl.u32 %v1197, 16
      %v1350 = vrot.slane %v1348, 7
      %v1351 = vshll.u32 %v1197, 16
      %v1353 = vor.u32 %v1350, %v1351
      %v1354 = vsel %vm1202, %v1346, %v1353
      %v1355 = vrot.slane %v1350, 4
      %v1357 = vshrl.u32 %v1198, 16
      %v1359 = vrot.slane %v1357, 7
      %v1360 = vshll.u32 %v1198, 16
      %v1362 = vor.u32 %v1359, %v1360
      %v1363 = vrot.slane %v1359, 4
      %v1365 = vshrl.u32 %v1199, 16
      %v1367 = vrot.slane %v1365, 7
      %v1368 = vshll.u32 %v1199, 16
      %v1370 = vor.u32 %v1367, %v1368
      %v1371 = vsel %vm1202, %v1363, %v1370
      %v1372 = vrot.slane %v1367, 4
      %vm1403 = vcmask 60416
      %vm1404 = vsmask.f32 7938
      %vm1405 = vmand %vm1403, %vm1404
      %v1406 = vld [vmem:[#allocation2] sm:$0xf]
      %v1407 = vsel %vm1405, %v1209, %v1406
      %1408 = vst [vmem:[#allocation2] sm:$0xf] %v1407
      %vm1409 = vcmask 60416
      %1410 = vst.msk [vmem:[#allocation2 + $0x4] sm:$0xf] %vm1409, %v1218
      %vm1411 = vcmask 57344
      %vm1412 = vmand %vm1411, %vm1200
      %v1413 = vld [vmem:[#allocation2 + $0x8] sm:$0x1]
      %v1414 = vsel %vm1412, %v1219, %v1413
      %1415 = vst [vmem:[#allocation2 + $0x8] sm:$0x1] %v1414
      %v1416 = vld [vmem:[#allocation2 + $0xc] sm:$0xf]
      %v1417 = vsel %vm1405, %v1226, %v1416
      %1418 = vst [vmem:[#allocation2 + $0xc] sm:$0xf] %v1417
      %1419 = vst.msk [vmem:[#allocation2 + $0x10] sm:$0xf] %vm1409, %v1235
      %v1420 = vld [vmem:[#allocation2 + $0x14] sm:$0x1]
      %v1421 = vsel %vm1412, %v1236, %v1420
      %1422 = vst [vmem:[#allocation2 + $0x14] sm:$0x1] %v1421
      %v1423 = vld [vmem:[#allocation2 + $0x18] sm:$0xf]
      %v1424 = vsel %vm1405, %v1243, %v1423
      %1425 = vst [vmem:[#allocation2 + $0x18] sm:$0xf] %v1424
      %1426 = vst.msk [vmem:[#allocation2 + $0x1c] sm:$0xf] %vm1409, %v1252
      %v1427 = vld [vmem:[#allocation2 + $0x20] sm:$0x1]
      %v1428 = vsel %vm1412, %v1253, %v1427
      %1429 = vst [vmem:[#allocation2 + $0x20] sm:$0x1] %v1428
      %v1430 = vld [vmem:[#allocation2 + $0x24] sm:$0xf]
      %v1431 = vsel %vm1405, %v1260, %v1430
      %1432 = vst [vmem:[#allocation2 + $0x24] sm:$0xf] %v1431
      %1433 = vst.msk [vmem:[#allocation2 + $0x28] sm:$0xf] %vm1409, %v1269
      %v1434 = vld [vmem:[#allocation2 + $0x2c] sm:$0x1]
      %v1435 = vsel %vm1412, %v1270, %v1434
      %1436 = vst [vmem:[#allocation2 + $0x2c] sm:$0x1] %v1435
      %v1437 = vld [vmem:[#allocation2 + $0x30] sm:$0xf]
      %v1438 = vsel %vm1405, %v1277, %v1437
      %1439 = vst [vmem:[#allocation2 + $0x30] sm:$0xf] %v1438
      %1440 = vst.msk [vmem:[#allocation2 + $0x34] sm:$0xf] %vm1409, %v1286
      %v1441 = vld [vmem:[#allocation2 + $0x38] sm:$0x1]
      %v1442 = vsel %vm1412, %v1287, %v1441
      %1443 = vst [vmem:[#allocation2 + $0x38] sm:$0x1] %v1442
      %v1444 = vld [vmem:[#allocation2 + $0x3c] sm:$0xf]
      %v1445 = vsel %vm1405, %v1294, %v1444
      %1446 = vst [vmem:[#allocation2 + $0x3c] sm:$0xf] %v1445
      %1447 = vst.msk [vmem:[#allocation2 + $0x40] sm:$0xf] %vm1409, %v1303
      %v1448 = vld [vmem:[#allocation2 + $0x44] sm:$0x1]
      %v1449 = vsel %vm1412, %v1304, %v1448
      %1450 = vst [vmem:[#allocation2 + $0x44] sm:$0x1] %v1449
      %v1451 = vld [vmem:[#allocation2 + $0x48] sm:$0xf]
      %v1452 = vsel %vm1405, %v1311, %v1451
      %1453 = vst [vmem:[#allocation2 + $0x48] sm:$0xf] %v1452
      %1454 = vst.msk [vmem:[#allocation2 + $0x4c] sm:$0xf] %vm1409, %v1320
      %v1455 = vld [vmem:[#allocation2 + $0x50] sm:$0x1]
      %v1456 = vsel %vm1412, %v1321, %v1455
      %1457 = vst [vmem:[#allocation2 + $0x50] sm:$0x1] %v1456
      %v1458 = vld [vmem:[#allocation2 + $0x54] sm:$0xf]
      %v1459 = vsel %vm1405, %v1328, %v1458
      %1460 = vst [vmem:[#allocation2 + $0x54] sm:$0xf] %v1459
      %1461 = vst.msk [vmem:[#allocation2 + $0x58] sm:$0xf] %vm1409, %v1337
      %v1462 = vld [vmem:[#allocation2 + $0x5c] sm:$0x1]
      %v1463 = vsel %vm1412, %v1338, %v1462
      %1464 = vst [vmem:[#allocation2 + $0x5c] sm:$0x1] %v1463
      %v1465 = vld [vmem:[#allocation2 + $0x60] sm:$0xf]
      %v1466 = vsel %vm1405, %v1345, %v1465
      %1467 = vst [vmem:[#allocation2 + $0x60] sm:$0xf] %v1466
      %1468 = vst.msk [vmem:[#allocation2 + $0x64] sm:$0xf] %vm1409, %v1354
      %v1469 = vld [vmem:[#allocation2 + $0x68] sm:$0x1]
      %v1470 = vsel %vm1412, %v1355, %v1469
      %1471 = vst [vmem:[#allocation2 + $0x68] sm:$0x1] %v1470
      %v1472 = vld [vmem:[#allocation2 + $0x6c] sm:$0xf]
      %v1473 = vsel %vm1405, %v1362, %v1472
      %1474 = vst [vmem:[#allocation2 + $0x6c] sm:$0xf] %v1473
      %1475 = vst.msk [vmem:[#allocation2 + $0x70] sm:$0xf] %vm1409, %v1371
      %v1476 = vld [vmem:[#allocation2 + $0x74] sm:$0x1]
      %v1477 = vsel %vm1412, %v1372, %v1476
      %1478 = vst [vmem:[#allocation2 + $0x74] sm:$0x1] %v1477
      %v1479 = vld [vmem:[#allocation2] sm:$0x1]
      %v1480 = vsel %vm1412, 0, %v1479
      %1481 = vst [vmem:[#allocation2] sm:$0x1] %v1480
      %v1482 = vld [vmem:[#allocation2 + $0xc] sm:$0x1]
      %v1483 = vsel %vm1412, 0, %v1482
      %1484 = vst [vmem:[#allocation2 + $0xc] sm:$0x1] %v1483
      %v1485 = vld [vmem:[#allocation2 + $0x18] sm:$0x1]
      %v1486 = vsel %vm1412, 0, %v1485
      %1487 = vst [vmem:[#allocation2 + $0x18] sm:$0x1] %v1486
      %v1488 = vld [vmem:[#allocation2 + $0x24] sm:$0x1]
      %v1489 = vsel %vm1412, 0, %v1488
      %1490 = vst [vmem:[#allocation2 + $0x24] sm:$0x1] %v1489
      %v1491 = vld [vmem:[#allocation2 + $0x30] sm:$0x1]
      %v1492 = vsel %vm1412, 0, %v1491
      %1493 = vst [vmem:[#allocation2 + $0x30] sm:$0x1] %v1492
      %v1494 = vld [vmem:[#allocation2 + $0x3c] sm:$0x1]
      %v1495 = vsel %vm1412, 0, %v1494
      %1496 = vst [vmem:[#allocation2 + $0x3c] sm:$0x1] %v1495
      %v1497 = vld [vmem:[#allocation2 + $0x48] sm:$0x1]
      %v1498 = vsel %vm1412, 0, %v1497
      %1499 = vst [vmem:[#allocation2 + $0x48] sm:$0x1] %v1498
      %v1500 = vld [vmem:[#allocation2 + $0x54] sm:$0x1]
      %v1501 = vsel %vm1412, 0, %v1500
      %1502 = vst [vmem:[#allocation2 + $0x54] sm:$0x1] %v1501
      %v1503 = vld [vmem:[#allocation2 + $0x60] sm:$0x1]
      %v1504 = vsel %vm1412, 0, %v1503
      %1505 = vst [vmem:[#allocation2 + $0x60] sm:$0x1] %v1504
      %v1506 = vld [vmem:[#allocation2 + $0x6c] sm:$0x1]
      %v1507 = vsel %vm1412, 0, %v1506
      %1508 = vst [vmem:[#allocation2 + $0x6c] sm:$0x1] %v1507
      %vm1509 = vmand %vm1411, %vm1404
      %v1510 = vld [vmem:[#allocation2 + $0x8] sm:$0x1]
      %v1511 = vsel %vm1509, 0, %v1510
      %1512 = vst [vmem:[#allocation2 + $0x8] sm:$0x1] %v1511
      %v1513 = vld [vmem:[#allocation2 + $0x14] sm:$0x1]
      %v1514 = vsel %vm1509, 0, %v1513
      %1515 = vst [vmem:[#allocation2 + $0x14] sm:$0x1] %v1514
      %v1516 = vld [vmem:[#allocation2 + $0x20] sm:$0x1]
      %v1517 = vsel %vm1509, 0, %v1516
      %1518 = vst [vmem:[#allocation2 + $0x20] sm:$0x1] %v1517
      %v1519 = vld [vmem:[#allocation2 + $0x2c] sm:$0x1]
      %v1520 = vsel %vm1509, 0, %v1519
      %1521 = vst [vmem:[#allocation2 + $0x2c] sm:$0x1] %v1520
      %v1522 = vld [vmem:[#allocation2 + $0x38] sm:$0x1]
      %v1523 = vsel %vm1509, 0, %v1522
      %1524 = vst [vmem:[#allocation2 + $0x38] sm:$0x1] %v1523
      %v1525 = vld [vmem:[#allocation2 + $0x44] sm:$0x1]
      %v1526 = vsel %vm1509, 0, %v1525
      %1527 = vst [vmem:[#allocation2 + $0x44] sm:$0x1] %v1526
      %v1528 = vld [vmem:[#allocation2 + $0x50] sm:$0x1]
      %v1529 = vsel %vm1509, 0, %v1528
      %1530 = vst [vmem:[#allocation2 + $0x50] sm:$0x1] %v1529
      %v1531 = vld [vmem:[#allocation2 + $0x5c] sm:$0x1]
      %v1532 = vsel %vm1509, 0, %v1531
      %1533 = vst [vmem:[#allocation2 + $0x5c] sm:$0x1] %v1532
      %v1534 = vld [vmem:[#allocation2 + $0x68] sm:$0x1]
      %v1535 = vsel %vm1509, 0, %v1534
      %1536 = vst [vmem:[#allocation2 + $0x68] sm:$0x1] %v1535
      %v1537 = vld [vmem:[#allocation2 + $0x74] sm:$0x1]
      %v1538 = vsel %vm1509, 0, %v1537
      %1539 = vst [vmem:[#allocation2 + $0x74] sm:$0x1] %v1538
      %p1540 = scmp.eq.s32.totalorder %s21, 0
      // Predicated region
      $region41: #{basic_block_forward.1} parent=39 // pred_check
        %p1541 = pneg %p1540
      $region42: #{basic_block_forward.1} parent=39 // pred_check_branch
        %1543 = sbr.rel (%p1541) target = $region44
      $region43: #{basic_block_forward.1} parent=39 // pred_region
        %1544 = vst.msk [vmem:[#allocation2] sm:$0xf] %vm1409, 0
        %1545 = vst.msk [vmem:[#allocation2 + $0x4] sm:$0xf] %vm1409, 0
        %vm1546 = vcmask 57344
        %1547 = vst.msk [vmem:[#allocation2 + $0x8] sm:$0x1] %vm1546, 0
      $region44: #{basic_block_forward.1} parent=39 // pred_fallthru
        _
      %p1548 = scmp.eq.s32.totalorder %s21, 1
      // Predicated region
      $region45: #{basic_block_forward.1} parent=39 // pred_check
        %p1549 = pneg %p1548
      $region46: #{basic_block_forward.1} parent=39 // pred_check_branch
        %1551 = sbr.rel (%p1549) target = $region48
      $region47: #{basic_block_forward.1} parent=39 // pred_region
        %s1552 = scalar_lea.vmem [#allocation2], 108
        %1553 = vst.msk [vmem:[%s1552] sm:$0xf] %vm1409, 0
        %1554 = vst.msk [vmem:[%s1552 + $0x4] sm:$0xf] %vm1409, 0
        %vm1555 = vcmask 57344
        %1556 = vst.msk [vmem:[%s1552 + $0x8] sm:$0x1] %vm1555, 0
      $region48: #{basic_block_forward.1} parent=39 // pred_fallthru
        _
      %v1557 = vld [vmem:[#allocation2] sm:$0xf]
      %v1558 = vld [vmem:[#allocation2 + $0x4] sm:$0xf]
      %v1559 = vld [vmem:[#allocation2 + $0x8] sm:$0x1]
      %v1560 = vld [vmem:[#allocation2 + $0xc] sm:$0xf]
      %v1561 = vld [vmem:[#allocation2 + $0x10] sm:$0xf]
      %v1562 = vld [vmem:[#allocation2 + $0x14] sm:$0x1]
      %v1563 = vld [vmem:[#allocation2 + $0x18] sm:$0xf]
      %v1564 = vld [vmem:[#allocation2 + $0x1c] sm:$0xf]
      %v1565 = vld [vmem:[#allocation2 + $0x20] sm:$0x1]
      %v1566 = vld [vmem:[#allocation2 + $0x24] sm:$0xf]
      %v1567 = vld [vmem:[#allocation2 + $0x28] sm:$0xf]
      %v1568 = vld [vmem:[#allocation2 + $0x2c] sm:$0x1]
      %v1569 = vld [vmem:[#allocation2 + $0x30] sm:$0xf]
      %v1570 = vld [vmem:[#allocation2 + $0x34] sm:$0xf]
      %v1571 = vld [vmem:[#allocation2 + $0x38] sm:$0x1]
      %v1572 = vld [vmem:[#allocation2 + $0x3c] sm:$0xf]
      %v1573 = vld [vmem:[#allocation2 + $0x40] sm:$0xf]
      %v1574 = vld [vmem:[#allocation2 + $0x44] sm:$0x1]
      %v1575 = vld [vmem:[#allocation2 + $0x48] sm:$0xf]
      %v1576 = vld [vmem:[#allocation2 + $0x4c] sm:$0xf]
      %v1577 = vld [vmem:[#allocation2 + $0x50] sm:$0x1]
      %v1578 = vld [vmem:[#allocation2 + $0x54] sm:$0xf]
      %v1579 = vld [vmem:[#allocation2 + $0x58] sm:$0xf]
      %v1580 = vld [vmem:[#allocation2 + $0x5c] sm:$0x1]
      %v1581 = vld [vmem:[#allocation2 + $0x60] sm:$0xf]
      %v1582 = vld [vmem:[#allocation2 + $0x64] sm:$0xf]
      %v1583 = vld [vmem:[#allocation2 + $0x68] sm:$0x1]
      %v1584 = vld [vmem:[#allocation2 + $0x6c] sm:$0xf]
      %v1585 = vld [vmem:[#allocation2 + $0x70] sm:$0xf]
      %v1586 = vld [vmem:[#allocation2 + $0x74] sm:$0x1]
      %v1603 = vunpack.c.l.b16 %v1557
      %v1604 = vunpack.c.l.b16 %v1558
      %v1605 = vunpack.c.l.b16 %v1560
      %v1606 = vunpack.c.l.b16 %v1561
      %v1607 = vunpack.c.l.b16 %v1563
      %v1608 = vunpack.c.l.b16 %v1564
      %v1609 = vunpack.c.l.b16 %v1566
      %v1610 = vunpack.c.l.b16 %v1567
      %v1611 = vunpack.c.l.b16 %v1569
      %v1612 = vunpack.c.l.b16 %v1570
      %v1613 = vunpack.c.l.b16 %v1572
      %v1614 = vunpack.c.l.b16 %v1573
      %v1615 = vunpack.c.l.b16 %v1575
      %v1616 = vunpack.c.l.b16 %v1576
      %v1617 = vunpack.c.l.b16 %v1578
      %v1618 = vunpack.c.l.b16 %v1579
      %v1619 = vpack.c.b16 %v1604, %v1603
      %v1620 = vpack.c.b16 %v1606, %v1605
      %v1621 = vpack.c.b16 %v1608, %v1607
      %v1622 = vpack.c.b16 %v1610, %v1609
      %v1623 = vpack.c.b16 %v1612, %v1611
      %v1624 = vpack.c.b16 %v1614, %v1613
      %v1625 = vpack.c.b16 %v1616, %v1615
      %v1626 = vpack.c.b16 %v1618, %v1617
      %v1635 = vunpack.c.l.b16 %v1559
      %v1636 = vunpack.c.l.b16 %v1562
      %v1637 = vunpack.c.l.b16 %v1565
      %v1638 = vunpack.c.l.b16 %v1568
      %v1639 = vunpack.c.l.b16 %v1571
      %v1640 = vunpack.c.l.b16 %v1574
      %v1641 = vunpack.c.l.b16 %v1577
      %v1642 = vunpack.c.l.b16 %v1580
      %v1643 = vpack.c.b16 %v1635, %v1635
      %v1644 = vpack.c.b16 %v1636, %v1636
      %v1645 = vpack.c.b16 %v1637, %v1637
      %v1646 = vpack.c.b16 %v1638, %v1638
      %v1647 = vpack.c.b16 %v1639, %v1639
      %v1648 = vpack.c.b16 %v1640, %v1640
      %v1649 = vpack.c.b16 %v1641, %v1641
      %v1650 = vpack.c.b16 %v1642, %v1642
      %vm1651 = vsmask.f32 7424
      %v1653 = vshrl.u32 %v1619, 16
      %v1655 = vshll.u32 %v1619, 16
      %v1657 = vrot.slane %v1655, 1
      %v1658 = vor.u32 %v1653, %v1657
      %v1660 = vshll.u32 %v1643, 16
      %v1662 = vrot.slane %v1660, 1
      %v1663 = vsel %vm1651, %v1658, %v1662
      %v1665 = vshrl.u32 %v1620, 16
      %v1667 = vshll.u32 %v1620, 16
      %v1669 = vrot.slane %v1667, 1
      %v1670 = vor.u32 %v1665, %v1669
      %v1672 = vshll.u32 %v1644, 16
      %v1674 = vrot.slane %v1672, 1
      %v1675 = vsel %vm1651, %v1670, %v1674
      %v1677 = vshrl.u32 %v1621, 16
      %v1679 = vshll.u32 %v1621, 16
      %v1681 = vrot.slane %v1679, 1
      %v1682 = vor.u32 %v1677, %v1681
      %v1684 = vshll.u32 %v1645, 16
      %v1686 = vrot.slane %v1684, 1
      %v1687 = vsel %vm1651, %v1682, %v1686
      %v1689 = vshrl.u32 %v1622, 16
      %v1691 = vshll.u32 %v1622, 16
      %v1693 = vrot.slane %v1691, 1
      %v1694 = vor.u32 %v1689, %v1693
      %v1696 = vshll.u32 %v1646, 16
      %v1698 = vrot.slane %v1696, 1
      %v1699 = vsel %vm1651, %v1694, %v1698
      %v1701 = vshrl.u32 %v1623, 16
      %v1703 = vshll.u32 %v1623, 16
      %v1705 = vrot.slane %v1703, 1
      %v1706 = vor.u32 %v1701, %v1705
      %v1708 = vshll.u32 %v1647, 16
      %v1710 = vrot.slane %v1708, 1
      %v1711 = vsel %vm1651, %v1706, %v1710
      %v1713 = vshrl.u32 %v1624, 16
      %v1715 = vshll.u32 %v1624, 16
      %v1717 = vrot.slane %v1715, 1
      %v1718 = vor.u32 %v1713, %v1717
      %v1720 = vshll.u32 %v1648, 16
      %v1722 = vrot.slane %v1720, 1
      %v1723 = vsel %vm1651, %v1718, %v1722
      %v1725 = vshrl.u32 %v1625, 16
      %v1727 = vshll.u32 %v1625, 16
      %v1729 = vrot.slane %v1727, 1
      %v1730 = vor.u32 %v1725, %v1729
      %v1732 = vshll.u32 %v1649, 16
      %v1734 = vrot.slane %v1732, 1
      %v1735 = vsel %vm1651, %v1730, %v1734
      %v1737 = vshrl.u32 %v1626, 16
      %v1739 = vshll.u32 %v1626, 16
      %v1741 = vrot.slane %v1739, 1
      %v1742 = vor.u32 %v1737, %v1741
      %v1744 = vshll.u32 %v1650, 16
      %v1746 = vrot.slane %v1744, 1
      %v1747 = vsel %vm1651, %v1742, %v1746
      %1748 = vrot.lane.b32.xlu0 %v1663, 8
      %v1749 = vpop.permute.xlu0 %1748
      %1750 = vrot.lane.b32.xlu0 %v1675, 8
      %v1751 = vpop.permute.xlu0 %1750
      %1752 = vrot.lane.b32.xlu0 %v1687, 8
      %v1753 = vpop.permute.xlu0 %1752
      %1754 = vrot.lane.b32.xlu0 %v1699, 8
      %v1755 = vpop.permute.xlu0 %1754
      %1756 = vrot.lane.b32.xlu0 %v1711, 8
      %v1757 = vpop.permute.xlu0 %1756
      %1758 = vrot.lane.b32.xlu0 %v1723, 8
      %v1759 = vpop.permute.xlu0 %1758
      %1760 = vrot.lane.b32.xlu0 %v1735, 8
      %v1761 = vpop.permute.xlu0 %1760
      %1762 = vrot.lane.b32.xlu0 %v1747, 8
      %v1763 = vpop.permute.xlu0 %1762
      %vm1764 = vcmask 1046528
      %v1765 = vrot.slane %v1619, 1
      %v1766 = vrot.slane %v1643, 1
      %v1767 = vsel %vm1764, %v1765, %v1766
      %v1768 = vrot.slane %v1620, 1
      %v1769 = vrot.slane %v1644, 1
      %v1770 = vsel %vm1764, %v1768, %v1769
      %v1771 = vrot.slane %v1621, 1
      %v1772 = vrot.slane %v1645, 1
      %v1773 = vsel %vm1764, %v1771, %v1772
      %v1774 = vrot.slane %v1622, 1
      %v1775 = vrot.slane %v1646, 1
      %v1776 = vsel %vm1764, %v1774, %v1775
      %v1777 = vrot.slane %v1623, 1
      %v1778 = vrot.slane %v1647, 1
      %v1779 = vsel %vm1764, %v1777, %v1778
      %v1780 = vrot.slane %v1624, 1
      %v1781 = vrot.slane %v1648, 1
      %v1782 = vsel %vm1764, %v1780, %v1781
      %v1783 = vrot.slane %v1625, 1
      %v1784 = vrot.slane %v1649, 1
      %v1785 = vsel %vm1764, %v1783, %v1784
      %v1786 = vrot.slane %v1626, 1
      %v1787 = vrot.slane %v1650, 1
      %v1788 = vsel %vm1764, %v1786, %v1787
      %1789 = vrot.lane.b32.xlu0 %v1767, 16
      %v1790 = vpop.permute.xlu0 %1789
      %1791 = vrot.lane.b32.xlu0 %v1770, 16
      %v1792 = vpop.permute.xlu0 %1791
      %1793 = vrot.lane.b32.xlu0 %v1773, 16
      %v1794 = vpop.permute.xlu0 %1793
      %1795 = vrot.lane.b32.xlu0 %v1776, 16
      %v1796 = vpop.permute.xlu0 %1795
      %1797 = vrot.lane.b32.xlu0 %v1779, 16
      %v1798 = vpop.permute.xlu0 %1797
      %1799 = vrot.lane.b32.xlu0 %v1782, 16
      %v1800 = vpop.permute.xlu0 %1799
      %1801 = vrot.lane.b32.xlu0 %v1785, 16
      %v1802 = vpop.permute.xlu0 %1801
      %1803 = vrot.lane.b32.xlu0 %v1788, 16
      %v1804 = vpop.permute.xlu0 %1803
      %v1806 = vsel %vm537, %v1619, %v1749
      %v1808 = vsel %vm537, %v1620, %v1751
      %v1810 = vsel %vm537, %v1621, %v1753
      %v1812 = vsel %vm537, %v1622, %v1755
      %v1814 = vsel %vm537, %v1623, %v1757
      %v1816 = vsel %vm537, %v1624, %v1759
      %v1818 = vsel %vm537, %v1625, %v1761
      %v1820 = vsel %vm537, %v1626, %v1763
      %v1822 = vsel %vm558, %v1806, %v1790
      %v1824 = vsel %vm558, %v1808, %v1792
      %v1826 = vsel %vm558, %v1810, %v1794
      %v1828 = vsel %vm558, %v1812, %v1796
      %v1830 = vsel %vm558, %v1814, %v1798
      %v1832 = vsel %vm558, %v1816, %v1800
      %v1834 = vsel %vm558, %v1818, %v1802
      %v1836 = vsel %vm558, %v1820, %v1804
      %v1837 = vld [vmem:[%s3] sm:$0xf]
      %v1838 = vld [vmem:[%s3 + $0x4] sm:$0xf]
      %v1839 = vld [vmem:[%s3 + $0x8] sm:$0xf]
      %v1842 = vunpack.c.l.b16 %v1581
      %v1843 = vunpack.c.l.b16 %v1582
      %v1844 = vpack.c.b16 %v1843, %v1842
      %v1846 = vunpack.c.l.b16 %v1583
      %v1847 = vpack.c.b16 %v1846, %v1846
      %v1849 = vshrl.u32 %v1844, 16
      %v1851 = vshll.u32 %v1844, 16
      %v1853 = vrot.slane %v1851, 1
      %v1854 = vor.u32 %v1849, %v1853
      %v1856 = vshll.u32 %v1847, 16
      %v1858 = vrot.slane %v1856, 1
      %v1859 = vsel %vm1651, %v1854, %v1858
      %1860 = vrot.lane.b32.xlu0 %v1859, 8
      %v1861 = vpop.permute.xlu0 %1860
      %v1862 = vrot.slane %v1844, 1
      %v1863 = vrot.slane %v1847, 1
      %v1864 = vsel %vm1764, %v1862, %v1863
      %1865 = vrot.lane.b32.xlu0 %v1864, 16
      %v1866 = vpop.permute.xlu0 %1865
      %v1868 = vsel %vm537, %v1844, %v1861
      %v1870 = vsel %vm558, %v1868, %v1866
      %s1871 = scalar_lea.vmem %s3, 12
      %v1872 = vld [vmem:[%s1871] sm:$0xf]
      %v1873 = vld [vmem:[%s1871 + $0x4] sm:$0xf]
      %v1874 = vld [vmem:[%s1871 + $0x8] sm:$0xf]
      %v1878 = vunpack.c.l.b16 %v1872
      %v1879 = vunpack.c.l.b16 %v1873
      %v1880 = vunpack.c.l.b16 %v1874
      %v1881 = vpack.c.b16 %v1879, %v1878
      %v1882 = vpack.c.b16 %v1880, %v1880
      %v1884 = vsel %vm635, %v1824, 0
      %v1886 = vsel %vm635, %v1826, 0
      %v1888 = vsel %vm635, %v1828, 0
      %v1890 = vsel %vm635, %v1830, 0
      %v1892 = vsel %vm635, %v1832, 0
      %v1894 = vsel %vm635, %v1834, 0
      %v1896 = vsel %vm635, %v1836, 0
      %v1898 = vsel %vm635, %v1870, 0
      %v1901 = vsel %vm666, %v1882, 0
      %1903 = vmatprep.subr.bf16.mxu0 0
      %1904 = vmatpush1.bf16.msra.mxu0 0
      %1905 = vmatprep.subr.bf16.mxu0 0
      %1906 = vmatpush1.bf16.msra.mxu0 0
      %1907 = vmatprep.subr.bf16.mxu0 0
      %1908 = vmatpush1.bf16.msra.mxu0 0
      %1909 = vmatprep.subr.bf16.mxu0 0
      %1910 = vmatpush1.bf16.msra.mxu0 0
      %1911 = vmatprep.subr.bf16.mxu0 0
      %1912 = vmatpush1.bf16.msra.mxu0 0
      %1913 = vmatprep.subr.bf16.mxu0 0
      %1914 = vmatpush1.bf16.msra.mxu0 0
      %1915 = vmatprep.subr.bf16.mxu0 0
      %1916 = vmatpush1.bf16.msra.mxu0 %v1901
      %1917 = vmatprep.subr.bf16.mxu0 0
      %1918 = vmatpush1.bf16.msra.mxu0 %v1881
      %1919 = vmatprep.subr.bf16.mxu0 0
      %1920 = vmatpush2.bf16.msra.mxu0 0
      %1921 = vmatprep.subr.bf16.mxu0 0
      %1922 = vmatpush2.bf16.msra.mxu0 0
      %1923 = vmatprep.subr.bf16.mxu0 0
      %1924 = vmatpush2.bf16.msra.mxu0 0
      %1925 = vmatprep.subr.bf16.mxu0 0
      %1926 = vmatpush2.bf16.msra.mxu0 0
      %1927 = vmatprep.subr.bf16.mxu0 0
      %1928 = vmatpush2.bf16.msra.mxu0 0
      %1929 = vmatprep.subr.bf16.mxu0 0
      %1930 = vmatpush2.bf16.msra.mxu0 0
      %1931 = vmatprep.subr.bf16.mxu0 0
      %1932 = vmatpush2.bf16.msra.mxu0 0
      %1933 = vmatprep.subr.bf16.mxu0 0
      %1934 = vmatpush2.bf16.msra.mxu0 0
      %1935 = vmatprep.mubr.bf16.mxu0 0
      %1936 = vmatmul.mubr.bf16.gmra.mxu0 %v1884
      %v1937 = vpop.f32.mrf.mxu0
      %v1938 = vadd.f32 0.0, %v1937
      %v1939 = vpop.f32.mrf.mxu0
      %v1940 = vpop.f32.mrf.mxu0
      %v1941 = vadd.f32 0.0, %v1940
      %v1942 = vpop.f32.mrf.mxu0
      %1943 = vmatprep.mubr.bf16.mxu0 0
      %1944 = vmatmul.mubr.bf16.gmra.mxu0 %v1886
      %v1945 = vpop.f32.mrf.mxu0
      %v1946 = vadd.f32 0.0, %v1945
      %v1947 = vpop.f32.mrf.mxu0
      %v1948 = vpop.f32.mrf.mxu0
      %v1949 = vadd.f32 0.0, %v1948
      %v1950 = vpop.f32.mrf.mxu0
      %1951 = vmatprep.mubr.bf16.mxu0 0
      %1952 = vmatmul.mubr.bf16.gmra.mxu0 %v1888
      %v1953 = vpop.f32.mrf.mxu0
      %v1954 = vadd.f32 0.0, %v1953
      %v1955 = vpop.f32.mrf.mxu0
      %v1956 = vpop.f32.mrf.mxu0
      %v1957 = vadd.f32 0.0, %v1956
      %v1958 = vpop.f32.mrf.mxu0
      %1959 = vmatprep.mubr.bf16.mxu0 0
      %1960 = vmatmul.mubr.bf16.gmra.mxu0 %v1890
      %v1961 = vpop.f32.mrf.mxu0
      %v1962 = vadd.f32 0.0, %v1961
      %v1963 = vpop.f32.mrf.mxu0
      %v1964 = vpop.f32.mrf.mxu0
      %v1965 = vadd.f32 0.0, %v1964
      %v1966 = vpop.f32.mrf.mxu0
      %1967 = vmatprep.mubr.bf16.mxu0 0
      %1968 = vmatmul.mubr.bf16.gmra.mxu0 %v1892
      %v1969 = vpop.f32.mrf.mxu0
      %v1970 = vadd.f32 0.0, %v1969
      %v1971 = vpop.f32.mrf.mxu0
      %v1972 = vpop.f32.mrf.mxu0
      %v1973 = vadd.f32 0.0, %v1972
      %v1974 = vpop.f32.mrf.mxu0
      %1975 = vmatprep.mubr.bf16.mxu0 0
      %1976 = vmatmul.mubr.bf16.gmra.mxu0 %v1894
      %v1977 = vpop.f32.mrf.mxu0
      %v1978 = vadd.f32 0.0, %v1977
      %v1979 = vpop.f32.mrf.mxu0
      %v1980 = vpop.f32.mrf.mxu0
      %v1981 = vadd.f32 0.0, %v1980
      %v1982 = vpop.f32.mrf.mxu0
      %1983 = vmatprep.mubr.bf16.mxu0 0
      %1984 = vmatmul.mubr.bf16.gmra.mxu0 %v1896
      %v1985 = vpop.f32.mrf.mxu0
      %v1986 = vadd.f32 0.0, %v1985
      %v1987 = vpop.f32.mrf.mxu0
      %v1988 = vpop.f32.mrf.mxu0
      %v1989 = vadd.f32 0.0, %v1988
      %v1990 = vpop.f32.mrf.mxu0
      %1991 = vmatprep.mubr.bf16.mxu0 0
      %1992 = vmatmul.mubr.bf16.gmra.mxu0 %v1898
      %v1993 = vpop.f32.mrf.mxu0
      %v1994 = vadd.f32 0.0, %v1993
      %v1995 = vpop.f32.mrf.mxu0
      %v1996 = vpop.f32.mrf.mxu0
      %v1997 = vadd.f32 0.0, %v1996
      %v1998 = vpop.f32.mrf.mxu0
      %1999 = vdwg.mxu0
      %v2003 = vunpack.c.l.b16 %v1837
      %v2004 = vunpack.c.l.b16 %v1838
      %v2005 = vunpack.c.l.b16 %v1839
      %v2006 = vpack.c.b16 %v2004, %v2003
      %v2007 = vpack.c.b16 %v2005, %v2005
      %v2009 = vsel %vm635, %v1822, 0
      %v2012 = vsel %vm666, %v2007, 0
      %2014 = vmatprep.subr.bf16.mxu0 0
      %2015 = vmatpush1.bf16.msra.mxu0 0
      %2016 = vmatprep.subr.bf16.mxu0 0
      %2017 = vmatpush1.bf16.msra.mxu0 0
      %2018 = vmatprep.subr.bf16.mxu0 0
      %2019 = vmatpush1.bf16.msra.mxu0 0
      %2020 = vmatprep.subr.bf16.mxu0 0
      %2021 = vmatpush1.bf16.msra.mxu0 0
      %2022 = vmatprep.subr.bf16.mxu0 0
      %2023 = vmatpush1.bf16.msra.mxu0 0
      %2024 = vmatprep.subr.bf16.mxu0 0
      %2025 = vmatpush1.bf16.msra.mxu0 0
      %2026 = vmatprep.subr.bf16.mxu0 0
      %2027 = vmatpush1.bf16.msra.mxu0 %v2012
      %2028 = vmatprep.subr.bf16.mxu0 0
      %2029 = vmatpush1.bf16.msra.mxu0 %v2006
      %2030 = vmatprep.subr.bf16.mxu0 0
      %2031 = vmatpush2.bf16.msra.mxu0 0
      %2032 = vmatprep.subr.bf16.mxu0 0
      %2033 = vmatpush2.bf16.msra.mxu0 0
      %2034 = vmatprep.subr.bf16.mxu0 0
      %2035 = vmatpush2.bf16.msra.mxu0 0
      %2036 = vmatprep.subr.bf16.mxu0 0
      %2037 = vmatpush2.bf16.msra.mxu0 0
      %2038 = vmatprep.subr.bf16.mxu0 0
      %2039 = vmatpush2.bf16.msra.mxu0 0
      %2040 = vmatprep.subr.bf16.mxu0 0
      %2041 = vmatpush2.bf16.msra.mxu0 0
      %2042 = vmatprep.subr.bf16.mxu0 0
      %2043 = vmatpush2.bf16.msra.mxu0 0
      %2044 = vmatprep.subr.bf16.mxu0 0
      %2045 = vmatpush2.bf16.msra.mxu0 0
      %2046 = vmatprep.mubr.bf16.mxu0 0
      %2047 = vmatmul.mubr.bf16.gmra.mxu0 %v2009
      %v2048 = vpop.f32.mrf.mxu0
      %v2049 = vadd.f32 %v1938, %v2048
      %v2050 = vpop.f32.mrf.mxu0
      %v2051 = vpop.f32.mrf.mxu0
      %v2052 = vadd.f32 %v1941, %v2051
      %v2053 = vpop.f32.mrf.mxu0
      %2054 = vmatprep.mubr.bf16.mxu0 0
      %2055 = vmatmul.mubr.bf16.gmra.mxu0 %v1884
      %v2056 = vpop.f32.mrf.mxu0
      %v2057 = vadd.f32 %v1946, %v2056
      %v2058 = vpop.f32.mrf.mxu0
      %v2059 = vpop.f32.mrf.mxu0
      %v2060 = vadd.f32 %v1949, %v2059
      %v2061 = vpop.f32.mrf.mxu0
      %2062 = vmatprep.mubr.bf16.mxu0 0
      %2063 = vmatmul.mubr.bf16.gmra.mxu0 %v1886
      %v2064 = vpop.f32.mrf.mxu0
      %v2065 = vadd.f32 %v1954, %v2064
      %v2066 = vpop.f32.mrf.mxu0
      %v2067 = vpop.f32.mrf.mxu0
      %v2068 = vadd.f32 %v1957, %v2067
      %v2069 = vpop.f32.mrf.mxu0
      %2070 = vmatprep.mubr.bf16.mxu0 0
      %2071 = vmatmul.mubr.bf16.gmra.mxu0 %v1888
      %v2072 = vpop.f32.mrf.mxu0
      %v2073 = vadd.f32 %v1962, %v2072
      %v2074 = vpop.f32.mrf.mxu0
      %v2075 = vpop.f32.mrf.mxu0
      %v2076 = vadd.f32 %v1965, %v2075
      %v2077 = vpop.f32.mrf.mxu0
      %2078 = vmatprep.mubr.bf16.mxu0 0
      %2079 = vmatmul.mubr.bf16.gmra.mxu0 %v1890
      %v2080 = vpop.f32.mrf.mxu0
      %v2081 = vadd.f32 %v1970, %v2080
      %v2082 = vpop.f32.mrf.mxu0
      %v2083 = vpop.f32.mrf.mxu0
      %v2084 = vadd.f32 %v1973, %v2083
      %v2085 = vpop.f32.mrf.mxu0
      %2086 = vmatprep.mubr.bf16.mxu0 0
      %2087 = vmatmul.mubr.bf16.gmra.mxu0 %v1892
      %v2088 = vpop.f32.mrf.mxu0
      %v2089 = vadd.f32 %v1978, %v2088
      %v2090 = vpop.f32.mrf.mxu0
      %v2091 = vpop.f32.mrf.mxu0
      %v2092 = vadd.f32 %v1981, %v2091
      %v2093 = vpop.f32.mrf.mxu0
      %2094 = vmatprep.mubr.bf16.mxu0 0
      %2095 = vmatmul.mubr.bf16.gmra.mxu0 %v1894
      %v2096 = vpop.f32.mrf.mxu0
      %v2097 = vadd.f32 %v1986, %v2096
      %v2098 = vpop.f32.mrf.mxu0
      %v2099 = vpop.f32.mrf.mxu0
      %v2100 = vadd.f32 %v1989, %v2099
      %v2101 = vpop.f32.mrf.mxu0
      %2102 = vmatprep.mubr.bf16.mxu0 0
      %2103 = vmatmul.mubr.bf16.gmra.mxu0 %v1896
      %v2104 = vpop.f32.mrf.mxu0
      %v2105 = vadd.f32 %v1994, %v2104
      %v2106 = vpop.f32.mrf.mxu0
      %v2107 = vpop.f32.mrf.mxu0
      %v2108 = vadd.f32 %v1997, %v2107
      %v2109 = vpop.f32.mrf.mxu0
      %2110 = vdwg.mxu0
      %v2113 = vunpack.c.l.b16 %v1584
      %v2114 = vunpack.c.l.b16 %v1585
      %v2115 = vpack.c.b16 %v2114, %v2113
      %v2117 = vunpack.c.l.b16 %v1586
      %v2118 = vpack.c.b16 %v2117, %v2117
      %v2120 = vshrl.u32 %v2115, 16
      %v2122 = vshll.u32 %v2115, 16
      %v2124 = vrot.slane %v2122, 1
      %v2125 = vor.u32 %v2120, %v2124
      %v2127 = vshll.u32 %v2118, 16
      %v2129 = vrot.slane %v2127, 1
      %v2130 = vsel %vm1651, %v2125, %v2129
      %2131 = vrot.lane.b32.xlu0 %v2130, 8
      %v2132 = vpop.permute.xlu0 %2131
      %v2133 = vrot.slane %v2115, 1
      %v2134 = vrot.slane %v2118, 1
      %v2135 = vsel %vm1764, %v2133, %v2134
      %2136 = vrot.lane.b32.xlu0 %v2135, 16
      %v2137 = vpop.permute.xlu0 %2136
      %v2139 = vsel %vm537, %v2115, %v2132
      %v2141 = vsel %vm558, %v2139, %v2137
      %s2142 = scalar_lea.vmem %s3, 24
      %v2143 = vld [vmem:[%s2142] sm:$0xf]
      %v2144 = vld [vmem:[%s2142 + $0x4] sm:$0xf]
      %v2145 = vld [vmem:[%s2142 + $0x8] sm:$0xf]
      %v2149 = vunpack.c.l.b16 %v2143
      %v2150 = vunpack.c.l.b16 %v2144
      %v2151 = vunpack.c.l.b16 %v2145
      %v2152 = vpack.c.b16 %v2150, %v2149
      %v2153 = vpack.c.b16 %v2151, %v2151
      %v2155 = vsel %vm635, %v2141, 0
      %v2158 = vsel %vm666, %v2153, 0
      %2160 = vmatprep.subr.bf16.mxu0 0
      %2161 = vmatpush1.bf16.msra.mxu0 0
      %2162 = vmatprep.subr.bf16.mxu0 0
      %2163 = vmatpush1.bf16.msra.mxu0 0
      %2164 = vmatprep.subr.bf16.mxu0 0
      %2165 = vmatpush1.bf16.msra.mxu0 0
      %2166 = vmatprep.subr.bf16.mxu0 0
      %2167 = vmatpush1.bf16.msra.mxu0 0
      %2168 = vmatprep.subr.bf16.mxu0 0
      %2169 = vmatpush1.bf16.msra.mxu0 0
      %2170 = vmatprep.subr.bf16.mxu0 0
      %2171 = vmatpush1.bf16.msra.mxu0 0
      %2172 = vmatprep.subr.bf16.mxu0 0
      %2173 = vmatpush1.bf16.msra.mxu0 %v2158
      %2174 = vmatprep.subr.bf16.mxu0 0
      %2175 = vmatpush1.bf16.msra.mxu0 %v2152
      %2176 = vmatprep.subr.bf16.mxu0 0
      %2177 = vmatpush2.bf16.msra.mxu0 0
      %2178 = vmatprep.subr.bf16.mxu0 0
      %2179 = vmatpush2.bf16.msra.mxu0 0
      %2180 = vmatprep.subr.bf16.mxu0 0
      %2181 = vmatpush2.bf16.msra.mxu0 0
      %2182 = vmatprep.subr.bf16.mxu0 0
      %2183 = vmatpush2.bf16.msra.mxu0 0
      %2184 = vmatprep.subr.bf16.mxu0 0
      %2185 = vmatpush2.bf16.msra.mxu0 0
      %2186 = vmatprep.subr.bf16.mxu0 0
      %2187 = vmatpush2.bf16.msra.mxu0 0
      %2188 = vmatprep.subr.bf16.mxu0 0
      %2189 = vmatpush2.bf16.msra.mxu0 0
      %2190 = vmatprep.subr.bf16.mxu0 0
      %2191 = vmatpush2.bf16.msra.mxu0 0
      %2192 = vmatprep.mubr.bf16.mxu0 0
      %2193 = vmatmul.mubr.bf16.gmra.mxu0 %v1886
      %v2194 = vpop.f32.mrf.mxu0
      %v2195 = vadd.f32 0.0, %v2194
      %v2196 = vpop.f32.mrf.mxu0
      %v2197 = vpop.f32.mrf.mxu0
      %v2198 = vadd.f32 0.0, %v2197
      %v2199 = vpop.f32.mrf.mxu0
      %2200 = vmatprep.mubr.bf16.mxu0 0
      %2201 = vmatmul.mubr.bf16.gmra.mxu0 %v1888
      %v2202 = vpop.f32.mrf.mxu0
      %v2203 = vadd.f32 0.0, %v2202
      %v2204 = vpop.f32.mrf.mxu0
      %v2205 = vpop.f32.mrf.mxu0
      %v2206 = vadd.f32 0.0, %v2205
      %v2207 = vpop.f32.mrf.mxu0
      %2208 = vmatprep.mubr.bf16.mxu0 0
      %2209 = vmatmul.mubr.bf16.gmra.mxu0 %v1890
      %v2210 = vpop.f32.mrf.mxu0
      %v2211 = vadd.f32 0.0, %v2210
      %v2212 = vpop.f32.mrf.mxu0
      %v2213 = vpop.f32.mrf.mxu0
      %v2214 = vadd.f32 0.0, %v2213
      %v2215 = vpop.f32.mrf.mxu0
      %2216 = vmatprep.mubr.bf16.mxu0 0
      %2217 = vmatmul.mubr.bf16.gmra.mxu0 %v1892
      %v2218 = vpop.f32.mrf.mxu0
      %v2219 = vadd.f32 0.0, %v2218
      %v2220 = vpop.f32.mrf.mxu0
      %v2221 = vpop.f32.mrf.mxu0
      %v2222 = vadd.f32 0.0, %v2221
      %v2223 = vpop.f32.mrf.mxu0
      %2224 = vmatprep.mubr.bf16.mxu0 0
      %2225 = vmatmul.mubr.bf16.gmra.mxu0 %v1894
      %v2226 = vpop.f32.mrf.mxu0
      %v2227 = vadd.f32 0.0, %v2226
      %v2228 = vpop.f32.mrf.mxu0
      %v2229 = vpop.f32.mrf.mxu0
      %v2230 = vadd.f32 0.0, %v2229
      %v2231 = vpop.f32.mrf.mxu0
      %2232 = vmatprep.mubr.bf16.mxu0 0
      %2233 = vmatmul.mubr.bf16.gmra.mxu0 %v1896
      %v2234 = vpop.f32.mrf.mxu0
      %v2235 = vadd.f32 0.0, %v2234
      %v2236 = vpop.f32.mrf.mxu0
      %v2237 = vpop.f32.mrf.mxu0
      %v2238 = vadd.f32 0.0, %v2237
      %v2239 = vpop.f32.mrf.mxu0
      %2240 = vmatprep.mubr.bf16.mxu0 0
      %2241 = vmatmul.mubr.bf16.gmra.mxu0 %v1898
      %v2242 = vpop.f32.mrf.mxu0
      %v2243 = vadd.f32 0.0, %v2242
      %v2244 = vpop.f32.mrf.mxu0
      %v2245 = vpop.f32.mrf.mxu0
      %v2246 = vadd.f32 0.0, %v2245
      %v2247 = vpop.f32.mrf.mxu0
      %2248 = vmatprep.mubr.bf16.mxu0 0
      %2249 = vmatmul.mubr.bf16.gmra.mxu0 %v2155
      %v2250 = vpop.f32.mrf.mxu0
      %v2251 = vadd.f32 0.0, %v2250
      %v2252 = vpop.f32.mrf.mxu0
      %v2253 = vpop.f32.mrf.mxu0
      %v2254 = vadd.f32 0.0, %v2253
      %v2255 = vpop.f32.mrf.mxu0
      %2256 = vdwg.mxu0
      %v2257 = vadd.f32 %v2049, %v2195
      %v2258 = vadd.f32 %v2052, %v2198
      %v2259 = vadd.f32 %v2057, %v2203
      %v2260 = vadd.f32 %v2060, %v2206
      %v2261 = vadd.f32 %v2065, %v2211
      %v2262 = vadd.f32 %v2068, %v2214
      %v2263 = vadd.f32 %v2073, %v2219
      %v2264 = vadd.f32 %v2076, %v2222
      %v2265 = vadd.f32 %v2081, %v2227
      %v2266 = vadd.f32 %v2084, %v2230
      %v2267 = vadd.f32 %v2089, %v2235
      %v2268 = vadd.f32 %v2092, %v2238
      %v2269 = vadd.f32 %v2097, %v2243
      %v2270 = vadd.f32 %v2100, %v2246
      %v2271 = vadd.f32 %v2105, %v2251
      %v2272 = vadd.f32 %v2108, %v2254
      %v2273 = vld [vmem:[%s4] sm:$0x1]
      %v2275 = vlaneseq
      %v2276 = vshrl.u32 %v2275, 7
      %v2277 = vsub.s32 0, %v2276
      %v2278 = vrot.slane %v2273, %v2277
      %v2280 = vadd.f32 %v2257, %v2278
      %v2281 = vadd.f32 %v2258, %v2278
      %v2282 = vadd.f32 %v2259, %v2278
      %v2283 = vadd.f32 %v2260, %v2278
      %v2284 = vadd.f32 %v2261, %v2278
      %v2285 = vadd.f32 %v2262, %v2278
      %v2286 = vadd.f32 %v2263, %v2278
      %v2287 = vadd.f32 %v2264, %v2278
      %v2288 = vadd.f32 %v2265, %v2278
      %v2289 = vadd.f32 %v2266, %v2278
      %v2290 = vadd.f32 %v2267, %v2278
      %v2291 = vadd.f32 %v2268, %v2278
      %v2292 = vadd.f32 %v2269, %v2278
      %v2293 = vadd.f32 %v2270, %v2278
      %v2294 = vadd.f32 %v2271, %v2278
      %v2295 = vadd.f32 %v2272, %v2278
      %v2312 = vadd.f32 %v2280, %v328
      %v2313 = vadd.f32 %v2281, %v330
      %v2314 = vadd.f32 %v2282, %v333
      %v2315 = vadd.f32 %v2283, %v335
      %v2316 = vadd.f32 %v2284, %v338
      %v2317 = vadd.f32 %v2285, %v340
      %v2318 = vadd.f32 %v2286, %v343
      %v2319 = vadd.f32 %v2287, %v345
      %v2320 = vadd.f32 %v2288, %v348
      %v2321 = vadd.f32 %v2289, %v350
      %v2322 = vadd.f32 %v2290, %v353
      %v2323 = vadd.f32 %v2291, %v355
      %v2324 = vadd.f32 %v2292, %v358
      %v2325 = vadd.f32 %v2293, %v360
      %v2326 = vadd.f32 %v2294, %v363
      %v2327 = vadd.f32 %v2295, %v365
      %v2328 = vmax.f32 %v2312, 0.0
      %v2329 = vmax.f32 %v2313, 0.0
      %v2330 = vmax.f32 %v2314, 0.0
      %v2331 = vmax.f32 %v2315, 0.0
      %v2332 = vmax.f32 %v2316, 0.0
      %v2333 = vmax.f32 %v2317, 0.0
      %v2334 = vmax.f32 %v2318, 0.0
      %v2335 = vmax.f32 %v2319, 0.0
      %v2336 = vmax.f32 %v2320, 0.0
      %v2337 = vmax.f32 %v2321, 0.0
      %v2338 = vmax.f32 %v2322, 0.0
      %v2339 = vmax.f32 %v2323, 0.0
      %v2340 = vmax.f32 %v2324, 0.0
      %v2341 = vmax.f32 %v2325, 0.0
      %v2342 = vmax.f32 %v2326, 0.0
      %v2343 = vmax.f32 %v2327, 0.0
      %v2344 = vcombine.low %v2328, %v2332
      %v2345 = vcombine.high %v2328, %v2332
      %v2347 = vunpack.c.l.s4 1983009808
      %v2348 = vunpack.c.0.s8 %v2347
      %v2349 = vlaneseq
      %v2350 = vshrl.u32 %v2349, 7
      %v2351 = vsub.s32 %v2348, %v2350
      %v2352 = vrot.slane %v2344, %v2351
      %v2354 = vunpack.c.l.s4 1983009808
      %v2355 = vunpack.c.0.s8 %v2354
      %v2356 = vlaneseq
      %v2357 = vshrl.u32 %v2356, 7
      %v2358 = vsub.s32 %v2355, %v2357
      %v2359 = vrot.slane %v2345, %v2358
      %v2360 = vcombine.low %v2330, %v2334
      %v2361 = vcombine.high %v2330, %v2334
      %v2363 = vunpack.c.l.s4 1983009808
      %v2364 = vunpack.c.0.s8 %v2363
      %v2365 = vlaneseq
      %v2366 = vshrl.u32 %v2365, 7
      %v2367 = vsub.s32 %v2364, %v2366
      %v2368 = vrot.slane %v2360, %v2367
      %v2370 = vunpack.c.l.s4 1983009808
      %v2371 = vunpack.c.0.s8 %v2370
      %v2372 = vlaneseq
      %v2373 = vshrl.u32 %v2372, 7
      %v2374 = vsub.s32 %v2371, %v2373
      %v2375 = vrot.slane %v2361, %v2374
      %v2376 = vcombine.low %v2336, %v2340
      %v2377 = vcombine.high %v2336, %v2340
      %v2379 = vunpack.c.l.s4 1983009808
      %v2380 = vunpack.c.0.s8 %v2379
      %v2381 = vlaneseq
      %v2382 = vshrl.u32 %v2381, 7
      %v2383 = vsub.s32 %v2380, %v2382
      %v2384 = vrot.slane %v2376, %v2383
      %v2386 = vunpack.c.l.s4 1983009808
      %v2387 = vunpack.c.0.s8 %v2386
      %v2388 = vlaneseq
      %v2389 = vshrl.u32 %v2388, 7
      %v2390 = vsub.s32 %v2387, %v2389
      %v2391 = vrot.slane %v2377, %v2390
      %v2392 = vcombine.low %v2338, %v2342
      %v2393 = vcombine.high %v2338, %v2342
      %v2395 = vunpack.c.l.s4 1983009808
      %v2396 = vunpack.c.0.s8 %v2395
      %v2397 = vlaneseq
      %v2398 = vshrl.u32 %v2397, 7
      %v2399 = vsub.s32 %v2396, %v2398
      %v2400 = vrot.slane %v2392, %v2399
      %v2402 = vunpack.c.l.s4 1983009808
      %v2403 = vunpack.c.0.s8 %v2402
      %v2404 = vlaneseq
      %v2405 = vshrl.u32 %v2404, 7
      %v2406 = vsub.s32 %v2403, %v2405
      %v2407 = vrot.slane %v2393, %v2406
      %v2408 = vcombine.low %v2352, %v2368
      %v2409 = vcombine.high %v2352, %v2368
      %v2411 = vunpack.c.l.s4 1934713408
      %v2412 = vunpack.c.0.s8 %v2411
      %v2413 = vlaneseq
      %v2414 = vshrl.u32 %v2413, 7
      %v2415 = vsub.s32 %v2412, %v2414
      %v2416 = vrot.slane %v2408, %v2415
      %v2418 = vunpack.c.l.s4 1934713408
      %v2419 = vunpack.c.0.s8 %v2418
      %v2420 = vlaneseq
      %v2421 = vshrl.u32 %v2420, 7
      %v2422 = vsub.s32 %v2419, %v2421
      %v2423 = vrot.slane %v2409, %v2422
      %v2424 = vcombine.low %v2359, %v2375
      %v2425 = vcombine.high %v2359, %v2375
      %v2427 = vunpack.c.l.s4 1934713408
      %v2428 = vunpack.c.0.s8 %v2427
      %v2429 = vlaneseq
      %v2430 = vshrl.u32 %v2429, 7
      %v2431 = vsub.s32 %v2428, %v2430
      %v2432 = vrot.slane %v2424, %v2431
      %v2434 = vunpack.c.l.s4 1934713408
      %v2435 = vunpack.c.0.s8 %v2434
      %v2436 = vlaneseq
      %v2437 = vshrl.u32 %v2436, 7
      %v2438 = vsub.s32 %v2435, %v2437
      %v2439 = vrot.slane %v2425, %v2438
      %v2440 = vcombine.low %v2384, %v2400
      %v2441 = vcombine.high %v2384, %v2400
      %v2443 = vunpack.c.l.s4 1934713408
      %v2444 = vunpack.c.0.s8 %v2443
      %v2445 = vlaneseq
      %v2446 = vshrl.u32 %v2445, 7
      %v2447 = vsub.s32 %v2444, %v2446
      %v2448 = vrot.slane %v2440, %v2447
      %v2450 = vunpack.c.l.s4 1934713408
      %v2451 = vunpack.c.0.s8 %v2450
      %v2452 = vlaneseq
      %v2453 = vshrl.u32 %v2452, 7
      %v2454 = vsub.s32 %v2451, %v2453
      %v2455 = vrot.slane %v2441, %v2454
      %v2456 = vcombine.low %v2391, %v2407
      %v2457 = vcombine.high %v2391, %v2407
      %v2459 = vunpack.c.l.s4 1934713408
      %v2460 = vunpack.c.0.s8 %v2459
      %v2461 = vlaneseq
      %v2462 = vshrl.u32 %v2461, 7
      %v2463 = vsub.s32 %v2460, %v2462
      %v2464 = vrot.slane %v2456, %v2463
      %v2466 = vunpack.c.l.s4 1934713408
      %v2467 = vunpack.c.0.s8 %v2466
      %v2468 = vlaneseq
      %v2469 = vshrl.u32 %v2468, 7
      %v2470 = vsub.s32 %v2467, %v2469
      %v2471 = vrot.slane %v2457, %v2470
      %v2472 = vcombine.low %v2416, %v2448
      %v2473 = vcombine.high %v2416, %v2448
      %v2474 = vcombine.low %v2423, %v2455
      %v2475 = vcombine.high %v2423, %v2455
      %v2476 = vcombine.low %v2432, %v2464
      %v2477 = vcombine.high %v2432, %v2464
      %v2478 = vcombine.low %v2439, %v2471
      %v2479 = vcombine.high %v2439, %v2471
      %v2480 = vcombine.low %v2329, %v2333
      %v2481 = vcombine.high %v2329, %v2333
      %v2483 = vunpack.c.l.s4 1983009808
      %v2484 = vunpack.c.0.s8 %v2483
      %v2485 = vlaneseq
      %v2486 = vshrl.u32 %v2485, 7
      %v2487 = vsub.s32 %v2484, %v2486
      %v2488 = vrot.slane %v2480, %v2487
      %v2490 = vunpack.c.l.s4 1983009808
      %v2491 = vunpack.c.0.s8 %v2490
      %v2492 = vlaneseq
      %v2493 = vshrl.u32 %v2492, 7
      %v2494 = vsub.s32 %v2491, %v2493
      %v2495 = vrot.slane %v2481, %v2494
      %v2496 = vcombine.low %v2331, %v2335
      %v2497 = vcombine.high %v2331, %v2335
      %v2499 = vunpack.c.l.s4 1983009808
      %v2500 = vunpack.c.0.s8 %v2499
      %v2501 = vlaneseq
      %v2502 = vshrl.u32 %v2501, 7
      %v2503 = vsub.s32 %v2500, %v2502
      %v2504 = vrot.slane %v2496, %v2503
      %v2506 = vunpack.c.l.s4 1983009808
      %v2507 = vunpack.c.0.s8 %v2506
      %v2508 = vlaneseq
      %v2509 = vshrl.u32 %v2508, 7
      %v2510 = vsub.s32 %v2507, %v2509
      %v2511 = vrot.slane %v2497, %v2510
      %v2512 = vcombine.low %v2337, %v2341
      %v2513 = vcombine.high %v2337, %v2341
      %v2515 = vunpack.c.l.s4 1983009808
      %v2516 = vunpack.c.0.s8 %v2515
      %v2517 = vlaneseq
      %v2518 = vshrl.u32 %v2517, 7
      %v2519 = vsub.s32 %v2516, %v2518
      %v2520 = vrot.slane %v2512, %v2519
      %v2522 = vunpack.c.l.s4 1983009808
      %v2523 = vunpack.c.0.s8 %v2522
      %v2524 = vlaneseq
      %v2525 = vshrl.u32 %v2524, 7
      %v2526 = vsub.s32 %v2523, %v2525
      %v2527 = vrot.slane %v2513, %v2526
      %v2528 = vcombine.low %v2339, %v2343
      %v2529 = vcombine.high %v2339, %v2343
      %v2531 = vunpack.c.l.s4 1983009808
      %v2532 = vunpack.c.0.s8 %v2531
      %v2533 = vlaneseq
      %v2534 = vshrl.u32 %v2533, 7
      %v2535 = vsub.s32 %v2532, %v2534
      %v2536 = vrot.slane %v2528, %v2535
      %v2538 = vunpack.c.l.s4 1983009808
      %v2539 = vunpack.c.0.s8 %v2538
      %v2540 = vlaneseq
      %v2541 = vshrl.u32 %v2540, 7
      %v2542 = vsub.s32 %v2539, %v2541
      %v2543 = vrot.slane %v2529, %v2542
      %v2544 = vcombine.low %v2488, %v2504
      %v2545 = vcombine.high %v2488, %v2504
      %v2547 = vunpack.c.l.s4 1934713408
      %v2548 = vunpack.c.0.s8 %v2547
      %v2549 = vlaneseq
      %v2550 = vshrl.u32 %v2549, 7
      %v2551 = vsub.s32 %v2548, %v2550
      %v2552 = vrot.slane %v2544, %v2551
      %v2554 = vunpack.c.l.s4 1934713408
      %v2555 = vunpack.c.0.s8 %v2554
      %v2556 = vlaneseq
      %v2557 = vshrl.u32 %v2556, 7
      %v2558 = vsub.s32 %v2555, %v2557
      %v2559 = vrot.slane %v2545, %v2558
      %v2560 = vcombine.low %v2495, %v2511
      %v2561 = vcombine.high %v2495, %v2511
      %v2563 = vunpack.c.l.s4 1934713408
      %v2564 = vunpack.c.0.s8 %v2563
      %v2565 = vlaneseq
      %v2566 = vshrl.u32 %v2565, 7
      %v2567 = vsub.s32 %v2564, %v2566
      %v2568 = vrot.slane %v2560, %v2567
      %v2570 = vunpack.c.l.s4 1934713408
      %v2571 = vunpack.c.0.s8 %v2570
      %v2572 = vlaneseq
      %v2573 = vshrl.u32 %v2572, 7
      %v2574 = vsub.s32 %v2571, %v2573
      %v2575 = vrot.slane %v2561, %v2574
      %v2576 = vcombine.low %v2520, %v2536
      %v2577 = vcombine.high %v2520, %v2536
      %v2579 = vunpack.c.l.s4 1934713408
      %v2580 = vunpack.c.0.s8 %v2579
      %v2581 = vlaneseq
      %v2582 = vshrl.u32 %v2581, 7
      %v2583 = vsub.s32 %v2580, %v2582
      %v2584 = vrot.slane %v2576, %v2583
      %v2586 = vunpack.c.l.s4 1934713408
      %v2587 = vunpack.c.0.s8 %v2586
      %v2588 = vlaneseq
      %v2589 = vshrl.u32 %v2588, 7
      %v2590 = vsub.s32 %v2587, %v2589
      %v2591 = vrot.slane %v2577, %v2590
      %v2592 = vcombine.low %v2527, %v2543
      %v2593 = vcombine.high %v2527, %v2543
      %v2595 = vunpack.c.l.s4 1934713408
      %v2596 = vunpack.c.0.s8 %v2595
      %v2597 = vlaneseq
      %v2598 = vshrl.u32 %v2597, 7
      %v2599 = vsub.s32 %v2596, %v2598
      %v2600 = vrot.slane %v2592, %v2599
      %v2602 = vunpack.c.l.s4 1934713408
      %v2603 = vunpack.c.0.s8 %v2602
      %v2604 = vlaneseq
      %v2605 = vshrl.u32 %v2604, 7
      %v2606 = vsub.s32 %v2603, %v2605
      %v2607 = vrot.slane %v2593, %v2606
      %v2608 = vcombine.low %v2552, %v2584
      %v2609 = vcombine.high %v2552, %v2584
      %v2610 = vcombine.low %v2559, %v2591
      %v2611 = vcombine.high %v2559, %v2591
      %v2612 = vcombine.low %v2568, %v2600
      %v2613 = vcombine.high %v2568, %v2600
      %v2614 = vcombine.low %v2575, %v2607
      %v2615 = vcombine.high %v2575, %v2607
      %2617 = vrot.lane.b32.xlu0 %v2473, 8
      %v2618 = vpop.permute.xlu0 %2617
      %2621 = vrot.lane.b32.xlu0 %v2474, 16
      %v2622 = vpop.permute.xlu0 %2621
      %2625 = vrot.lane.b32.xlu0 %v2475, 24
      %v2626 = vpop.permute.xlu0 %2625
      %2629 = vrot.lane.b32.xlu0 %v2476, 32
      %v2630 = vpop.permute.xlu0 %2629
      %2633 = vrot.lane.b32.xlu0 %v2477, 40
      %v2634 = vpop.permute.xlu0 %2633
      %2637 = vrot.lane.b32.xlu0 %v2478, 48
      %v2638 = vpop.permute.xlu0 %2637
      %2641 = vrot.lane.b32.xlu0 %v2479, 56
      %v2642 = vpop.permute.xlu0 %2641
      %2645 = vrot.lane.b32.xlu0 %v2608, 64
      %v2646 = vpop.permute.xlu0 %2645
      %2649 = vrot.lane.b32.xlu0 %v2609, 72
      %v2650 = vpop.permute.xlu0 %2649
      %2653 = vrot.lane.b32.xlu0 %v2610, 80
      %v2654 = vpop.permute.xlu0 %2653
      %2657 = vrot.lane.b32.xlu0 %v2611, 88
      %v2658 = vpop.permute.xlu0 %2657
      %2661 = vrot.lane.b32.xlu0 %v2612, 96
      %v2662 = vpop.permute.xlu0 %2661
      %2665 = vrot.lane.b32.xlu0 %v2613, 104
      %v2666 = vpop.permute.xlu0 %2665
      %2669 = vrot.lane.b32.xlu0 %v2614, 112
      %v2670 = vpop.permute.xlu0 %2669
      %2673 = vrot.lane.b32.xlu0 %v2615, 120
      %v2674 = vpop.permute.xlu0 %2673
      %v2676 = vsel %vm537, %v2472, %v2618
      %v2677 = vsel %vm558, %v2676, %v2622
      %v2678 = vsel %vm635, %v2677, %v2626
      %vm2679 = vcmask 261120
      %v2680 = vsel %vm2679, %v2678, %v2630
      %vm2681 = vcmask 326656
      %v2682 = vsel %vm2681, %v2680, %v2634
      %vm2683 = vcmask 392192
      %v2684 = vsel %vm2683, %v2682, %v2638
      %vm2685 = vcmask 457728
      %v2686 = vsel %vm2685, %v2684, %v2642
      %vm2687 = vcmask 523264
      %v2688 = vsel %vm2687, %v2686, %v2646
      %vm2689 = vcmask 588800
      %v2690 = vsel %vm2689, %v2688, %v2650
      %vm2691 = vcmask 654336
      %v2692 = vsel %vm2691, %v2690, %v2654
      %vm2693 = vcmask 719872
      %v2694 = vsel %vm2693, %v2692, %v2658
      %vm2695 = vcmask 785408
      %v2696 = vsel %vm2695, %v2694, %v2662
      %vm2697 = vcmask 850944
      %v2698 = vsel %vm2697, %v2696, %v2666
      %vm2699 = vcmask 916480
      %v2700 = vsel %vm2699, %v2698, %v2670
      %vm2701 = vcmask 982016
      %v2702 = vsel %vm2701, %v2700, %v2674
      %2703 = vst [vmem:[%s244] sm:$0xff] %v2702
      %p2704 = scmp.lt.s32.totalorder %s20, 1
      %s2705 = scalar_select %p2704, %s20, 1
      %p2706 = scmp.lt.s32.totalorder %s21, 1
      %s2707 = scalar_select %p2706, %s21, 1
      %s2708 = smul.addr %s2705, 2
      %s2709 = sadd.s32 %s2707, %s2708
      %s2710 = smul.addr %s2709, 8
      %s2711 = scalar_lea.vmem %s5, %s2710
      // Predicated region
      $region49: #{basic_block_forward.1} parent=39 // pred_check
        %p2712 = pneg %p158
      $region50: #{basic_block_forward.1} parent=39 // pred_check_branch
        %2714 = sbr.rel (%p2712) target = $region52
      $region51: #{basic_block_forward.1} parent=39 // pred_region
        _
      $region52: #{basic_block_forward.1} parent=39 // pred_fallthru
        _
    $region40: #{basic_block_forward.1} parent=5 // pred_fallthru
      _
    %p2715 = scmp.le.s32.totalorder 2, %s11
    // Predicated region
    $region53: #{basic_block_forward.1} parent=5 // pred_check
      %p2716 = pneg %p2715
    $region54: #{basic_block_forward.1} parent=5 // pred_check_branch
      %2718 = sbr.rel (%p2716) target = $region56
    $region55: #{basic_block_forward.1} parent=5 // pred_region
      %s2719 = ssub.s32 %s11, 2
      // Predicated region
      $region57: #{basic_block_forward.1} parent=55 // pred_check
        %p2720 = pneg %p164
      $region58: #{basic_block_forward.1} parent=55 // pred_check_branch
        %2722 = sbr.rel (%p2720) target = $region60
      $region59: #{basic_block_forward.1} parent=55 // pred_region
        %p2723 = scmp.lt.s32.totalorder %s22, 1
        %s2724 = scalar_select %p2723, %s22, 1
        %p2725 = scmp.lt.s32.totalorder %s23, 1
        %s2726 = scalar_select %p2725, %s23, 1
        %s2727 = smul.addr %s2724, 2
        %s2728 = sadd.s32 %s2726, %s2727
        %s2729 = smul.addr %s2728, 8
        %s2730 = scalar_lea.vmem %s5, %s2729
      $region60: #{basic_block_forward.1} parent=55 // pred_fallthru
        _
    $region56: #{basic_block_forward.1} parent=5 // pred_fallthru
      _
  $region6: #{basic_block_forward.1} parent=0 // loop_footer
    %s15 = sadd.s32 1, %s11
  $region7: #{basic_block_forward.1} parent=0 // loop_footer_branch
    %10 = sbr.rel target = $region3
  $region8: #{basic_block_forward.1} parent=0 // loop_exit
    _

</llo_original>
